<compile_context>
chip_gen: v7x
topology: tpu7x:2x2x1
jax: 0.10.0
libtpu: 0.0.40
codegen_flags: <defaults>
</compile_context>

<pallas_src>
import math
import functools

import jax
import jax.numpy as jnp
from jax.experimental import pallas as pl
from jax.experimental.pallas import tpu as pltpu


def _round_up(n, m):
    return ((n + m - 1) // m) * m


# ----------------------------------------------------------------------------
# Fused Pallas kernel: projections -> flash attention (all heads) -> out proj
# ----------------------------------------------------------------------------

def _mha_fused_kernel(*refs, n_heads, k_channels, channels,
                      ts_chunk, n_chunks, ts_valid,
                      has_mask, mask_tail, return_attn):
    H, Dk, C = n_heads, k_channels, channels
    f32 = jnp.float32
    bf16 = jnp.bfloat16

    (x_ref, c_ref, wq_ref, wk_ref, wv_ref, wo_ref,
     bq_ref, bk_ref, bv_ref, bo_ref) = refs[:10]
    pos = 10
    mask_ref = refs[pos] if has_mask else None
    pos += 1 if has_mask else 0
    out_ref = refs[pos]
    p_ref = refs[pos + 1] if return_attn else None
    pos += 2 if return_attn else 1
    k_scr, v_scr, acc_scr, m_scr, l_scr = refs[pos:pos + 5]

    tq = x_ref.shape[2]          # query row-tile width (time on lanes)
    ts_pad = k_scr.shape[2]      # padded key length
    qi = pl.program_id(1)

    # ---- K/V projections: once per batch element, kept resident in VMEM ----
    @pl.when(qi == 0)
    def _():
        cb = c_ref[0].astype(bf16)                                    # (C, Ts_pad)
        k = jnp.dot(wk_ref[...], cb, preferred_element_type=f32) + bk_ref[...]
        v = jnp.dot(wv_ref[...], cb, preferred_element_type=f32) + bv_ref[...]
        k_scr[...] = k.reshape(H, Dk, ts_pad).astype(bf16)
        v_scr[...] = v.reshape(H, Dk, ts_pad).astype(bf16)

    # ---- Q projection for this row tile (1/sqrt(Dk) folded into wq/bq) -----
    xb = x_ref[0].astype(bf16)                                        # (C, tq)
    q = jnp.dot(wq_ref[...], xb, preferred_element_type=f32) + bq_ref[...]
    q3 = q.reshape(H, Dk, tq)                                         # f32; Dk % 8 == 0 -> free

    def chunk_body(kc, h, qh):
        start = kc * ts_chunk
        if n_chunks > 1 and ts_chunk % 128 == 0:
            start = pl.multiple_of(start, 128)
        kh = k_scr[h, :, pl.ds(start, ts_chunk)]                      # (Dk, tS) bf16
        vh = v_scr[h, :, pl.ds(start, ts_chunk)]
        # scores (tS, tq): contract Dk (sublane axis of both operands).
        s = jax.lax.dot_general(kh, qh,
                                dimension_numbers=(((0,), (0,)), ((), ())),
                                preferred_element_type=f32)
        if has_mask:
            mk = mask_ref[0, pl.ds(start, ts_chunk), :]               # (tS, tq) int8
            s = jnp.where(mk != 0, s, f32(-1e4))                      # masked_fill semantics
        if mask_tail:
            key_idx = start + jax.lax.broadcasted_iota(jnp.int32, (ts_chunk, 1), 0)
            s = jnp.where(key_idx < ts_valid, s, f32(-1e4))
        m_prev = m_scr[h]                                             # (1, tq)
        m_new = jnp.maximum(m_prev, jnp.max(s, axis=0, keepdims=True))
        alpha = jnp.exp(m_prev - m_new)
        p = jnp.exp(s - m_new)                                        # (tS, tq)
        l_scr[h] = alpha * l_scr[h] + jnp.sum(p, axis=0, keepdims=True)
        acc_scr[h] = alpha * acc_scr[h] + jax.lax.dot_general(
            vh, p.astype(bf16),
            dimension_numbers=(((1,), (0,)), ((), ())),
            preferred_element_type=f32)                               # (Dk, tq)
        m_scr[h] = m_new
        if return_attn:
            # The wrapper forces n_chunks == 1 on this path, so m_new / l are final.
            p_ref[0, h] = p.astype(p_ref.dtype)

    # Heads outer (H is 2-4, static unroll), Ts chunks inner: bounds the live
    # range of the (tS, tq) softmax temporaries to one head at a time.
    for h in range(H):
        qh = q3[h].astype(bf16)                                       # (Dk, tq)
        m_scr[h] = jnp.full((1, tq), -jnp.inf, f32)
        l_scr[h] = jnp.zeros((1, tq), f32)
        acc_scr[h] = jnp.zeros((Dk, tq), f32)
        if n_chunks == 1:
            chunk_body(0, h, qh)
        else:
            @pl.loop(0, n_chunks)
            def _(kc, h=h, qh=qh):
                chunk_body(kc, h, qh)

    # ---- normalize + ONE merged output projection over all heads -----------
    o = acc_scr[...] * pl.reciprocal(l_scr[...], approx=True)         # (H, Dk, tq)
    y = jnp.dot(wo_ref[...], o.reshape(C, tq).astype(bf16),
                preferred_element_type=f32) + bo_ref[...]             # (Cout, tq)
    out_ref[0] = y.astype(out_ref.dtype)

    if return_attn:
        inv_l = 1.0 / l_scr[...]                                      # exact recip (debug path)
        p_ref[0] = (p_ref[0].astype(f32) * inv_l).astype(p_ref.dtype)


def fused_mha(x, c, mask, wq, wk, wv, wo, bq, bk, bv, bo, *,
              n_heads, tq, ts_chunk, n_chunks, ts_valid,
              mask_tail, return_attn):
    """x: (B, C, Tt_pad) f32, c: (B, C, Ts_pad) f32, mask: (B, Ts_pad, Tt_pad) int8 or None.
    Weights are channels-first (out, in) bf16; biases are (rows, 1) f32."""
    B, C, Tt_pad = x.shape
    Ts_pad = c.shape[2]
    Cout = wo.shape[0]
    H = n_heads
    Dk = C // H
    n_tq = Tt_pad // tq
    has_mask = mask is not None

    kernel = functools.partial(
        _mha_fused_kernel, n_heads=H, k_channels=Dk, channels=C,
        ts_chunk=ts_chunk, n_chunks=n_chunks, ts_valid=ts_valid,
        has_mask=has_mask, mask_tail=mask_tail, return_attn=return_attn)

    in_specs = [
        pl.BlockSpec((1, C, tq), lambda b, qi: (b, 0, qi)),        # x (query source)
        pl.BlockSpec((1, C, Ts_pad), lambda b, qi: (b, 0, 0)),     # c (key/value source)
        pl.BlockSpec((C, C), lambda b, qi: (0, 0)),                # w_q (scaled)
        pl.BlockSpec((C, C), lambda b, qi: (0, 0)),                # w_k
        pl.BlockSpec((C, C), lambda b, qi: (0, 0)),                # w_v
        pl.BlockSpec((Cout, C), lambda b, qi: (0, 0)),             # w_o
        pl.BlockSpec((C, 1), lambda b, qi: (0, 0)),                # b_q (scaled)
        pl.BlockSpec((C, 1), lambda b, qi: (0, 0)),                # b_k
        pl.BlockSpec((C, 1), lambda b, qi: (0, 0)),                # b_v
        pl.BlockSpec((Cout, 1), lambda b, qi: (0, 0)),             # b_o
    ]
    args = [x, c, wq, wk, wv, wo, bq, bk, bv, bo]
    if has_mask:
        in_specs.append(pl.BlockSpec((1, Ts_pad, tq), lambda b, qi: (b, 0, qi)))
        args.append(mask)

    out_shapes = [jax.ShapeDtypeStruct((B, Cout, Tt_pad), jnp.float32)]
    out_specs = [pl.BlockSpec((1, Cout, tq), lambda b, qi: (b, 0, qi))]
    if return_attn:
        out_shapes.append(jax.ShapeDtypeStruct((B, H, Ts_pad, Tt_pad), jnp.bfloat16))
        out_specs.append(pl.BlockSpec((1, H, Ts_pad, tq), lambda b, qi: (b, 0, 0, qi)))

    scratch_shapes = [
        pltpu.VMEM((H, Dk, Ts_pad), jnp.bfloat16),   # K (all heads), resident per batch elem
        pltpu.VMEM((H, Dk, Ts_pad), jnp.bfloat16),   # V
        pltpu.VMEM((H, Dk, tq), jnp.float32),        # flash accumulator (all heads)
        pltpu.VMEM((H, 1, tq), jnp.float32),         # running max
        pltpu.VMEM((H, 1, tq), jnp.float32),         # running sum
    ]

    return pl.pallas_call(
        kernel,
        out_shape=tuple(out_shapes),
        grid_spec=pltpu.PrefetchScalarGridSpec(
            num_scalar_prefetch=0,
            grid=(B, n_tq),
            in_specs=in_specs,
            out_specs=tuple(out_specs),
            scratch_shapes=scratch_shapes),
        compiler_params=pltpu.CompilerParams(
            # qi must stay "arbitrary": the K/V scratch written at qi == 0 is
            # reused by later qi steps of the same batch element.
            dimension_semantics=("parallel", "arbitrary"),
            vmem_limit_bytes=48 * 1024 * 1024),
    )(*args)


# ----------------------------------------------------------------------------
# Module wrapper
# ----------------------------------------------------------------------------

class MultiHeadAttentionPallas:

    def __init__(self, channels, out_channels, n_heads, key):
        assert channels % n_heads == 0
        self.channels = channels
        self.out_channels = out_channels
        self.n_heads = n_heads
        self.k_channels = channels // n_heads
        self.attn = None

        k1, k2, k3, k4, k5 = jax.random.split(key, 5)

        def xavier(k, cin, cout):
            limit = math.sqrt(6.0 / (cin + cout))
            return jax.random.uniform(k, (cin, cout), jnp.float32,
                                      minval=-limit, maxval=limit)

        # f32 master weights stored (Cin, Cout) so the reference is x_btc @ W + b.
        self.w_q = xavier(k1, channels, channels)
        self.w_k = xavier(k2, channels, channels)
        self.w_v = xavier(k3, channels, channels)
        self.w_o = xavier(k4, channels, out_channels)
        blim = 1.0 / math.sqrt(channels)
        bq, bk, bv, bo = jax.random.split(k5, 4)
        self.b_q = jax.random.uniform(bq, (channels,), jnp.float32, -blim, blim)
        self.b_k = jax.random.uniform(bk, (channels,), jnp.float32, -blim, blim)
        self.b_v = jax.random.uniform(bv, (channels,), jnp.float32, -blim, blim)
        self.b_o = jax.random.uniform(bo, (out_channels,), jnp.float32, -blim, blim)

        # Kernel-side parameters: channels-first (out, in) so the 1x1 convs are
        # plain W @ X matmuls on (C, T) tiles; 1/sqrt(Dk) folded into wq/bq once.
        scale = 1.0 / math.sqrt(self.k_channels)
        bf16 = jnp.bfloat16
        self.wq_k = (self.w_q * scale).T.astype(bf16)      # (C, C)
        self.wk_k = self.w_k.T.astype(bf16)
        self.wv_k = self.w_v.T.astype(bf16)
        self.wo_k = self.w_o.T.astype(bf16)                # (Cout, C)
        self.bq_k = (self.b_q * scale).reshape(channels, 1)
        self.bk_k = self.b_k.reshape(channels, 1)
        self.bv_k = self.b_v.reshape(channels, 1)
        self.bo_k = self.b_o.reshape(out_channels, 1)

    def __call__(self, x, c, attn_mask=None, return_attn=False):
        # x: (B, C, Tt), c: (B, C, Ts) — PyTorch Conv1d layout, consumed as-is.
        B, C, Tt = x.shape
        Ts = c.shape[2]
        H = self.n_heads

        # -- query row tiling --------------------------------------------------
        if Tt <= 256:
            tq, Tt_pad = Tt, Tt
        else:
            tq = 256
            Tt_pad = _round_up(Tt, tq)

        # -- key-time chunking (flash) -----------------------------------------
        if return_attn or Ts <= 512:
            # return_attn needs the full (Ts, tq) probabilities -> single chunk.
            ts_chunk, Ts_pad, n_chunks = Ts, Ts, 1
        else:
            ts_chunk = 512
            Ts_pad = _round_up(Ts, ts_chunk)
            n_chunks = Ts_pad // ts_chunk

        x_p = x if Tt_pad == Tt else jnp.pad(x, ((0, 0), (0, 0), (0, Tt_pad - Tt)))
        c_p = c if Ts_pad == Ts else jnp.pad(c, ((0, 0), (0, 0), (0, Ts_pad - Ts)))

        if attn_mask is not None:
            m = jnp.broadcast_to(attn_mask, (B, 1, Tt, Ts)).reshape(B, Tt, Ts)
            m = (jnp.transpose(m, (0, 2, 1)) != 0).astype(jnp.int8)   # (B, Ts, Tt) int8
            if Ts_pad != Ts or Tt_pad != Tt:
                m = jnp.pad(m, ((0, 0), (0, Ts_pad - Ts), (0, Tt_pad - Tt)))
            mask_tail = False
        else:
            m = None
            mask_tail = Ts_pad != Ts   # padded keys masked via in-kernel iota

        res = fused_mha(x_p, c_p, m,
                        self.wq_k, self.wk_k, self.wv_k, self.wo_k,
                        self.bq_k, self.bk_k, self.bv_k, self.bo_k,
                        n_heads=H, tq=tq, ts_chunk=ts_chunk, n_chunks=n_chunks,
                        ts_valid=Ts, mask_tail=mask_tail, return_attn=return_attn)

        y = res[0][:, :, :Tt]                       # (B, Cout, Tt) channels-first already
        if return_attn:
            p = jnp.transpose(res[1], (0, 1, 3, 2))[:, :, :Tt, :Ts].astype(jnp.float32)
            self.attn = p
            return y, p
        return y


# ----------------------------------------------------------------------------
# Reference (pure jnp, f32) for verification
# ----------------------------------------------------------------------------

def reference_forward(m, x, c, attn_mask):
    B, C, Tt = x.shape
    Ts = c.shape[2]
    H, Dk = m.n_heads, m.k_channels

    x_btc = jnp.transpose(x, (0, 2, 1))
    c_btc = jnp.transpose(c, (0, 2, 1))
    q = x_btc @ m.w_q + m.b_q
    k = c_btc @ m.w_k + m.b_k
    v = c_btc @ m.w_v + m.b_v
    q = q.reshape(B, Tt, H, Dk).transpose(0, 2, 1, 3)
    k = k.reshape(B, Ts, H, Dk).transpose(0, 2, 1, 3)
    v = v.reshape(B, Ts, H, Dk).transpose(0, 2, 1, 3)
    scores = jnp.einsum("bhtd,bhsd->bhts", q / math.sqrt(Dk), k)
    if attn_mask is not None:
        scores = jnp.where(attn_mask == 0, -1e4, scores)
    p = jax.nn.softmax(scores, axis=-1)
    out = jnp.einsum("bhts,bhsd->bhtd", p, v)
    out = out.transpose(0, 2, 1, 3).reshape(B, Tt, C)
    y = out @ m.w_o + m.b_o
    return jnp.transpose(y, (0, 2, 1)), p


if __name__ == "__main__":
    key = jax.random.PRNGKey(0)
    kp, kx, kc, km, kx2, kc2, km2 = jax.random.split(key, 7)

    # -- small config: single row tile, single key chunk ----------------------
    B, C, H, Cout = 2, 32, 4, 32           # channels=32, n_heads=4 -> k_channels=8
    Tt, Ts = 16, 24                        # cross-attention lengths
    module = MultiHeadAttentionPallas(C, Cout, H, kp)

    x = jax.random.normal(kx, (B, C, Tt), jnp.float32)
    c = jax.random.normal(kc, (B, C, Ts), jnp.float32)
    attn_mask = (jax.random.uniform(km, (B, 1, Tt, Ts)) > 0.2).astype(jnp.float32)

    y_fast = jax.block_until_ready(module(x, c, attn_mask))              # hot path
    y, p_attn = module(x, c, attn_mask, return_attn=True)                # debug path
    y = jax.block_until_ready(y)
    p_attn = jax.block_until_ready(p_attn)
    y_nomask = jax.block_until_ready(module(x, c, None))                 # no-mask variant

    y_ref, p_ref = reference_forward(module, x, c, attn_mask)
    y_ref_nm, _ = reference_forward(module, x, c, None)

    assert y_fast.shape == (B, Cout, Tt)
    assert y.shape == (B, Cout, Tt)
    assert p_attn.shape == (B, H, Tt, Ts)
    assert jnp.allclose(y_fast, y_ref, atol=5e-2, rtol=5e-2), "y (fast path) mismatch"
    assert jnp.allclose(y, y_ref, atol=5e-2, rtol=5e-2), "y mismatch"
    assert jnp.allclose(p_attn, p_ref, atol=5e-2, rtol=5e-2), "p_attn mismatch"
    assert jnp.allclose(y_nomask, y_ref_nm, atol=5e-2, rtol=5e-2), "no-mask y mismatch"

    # -- medium config: row tiling, Ts chunking, padding, tail masking --------
    B2, Tt2, Ts2 = 1, 300, 600
    x2 = jax.random.normal(kx2, (B2, C, Tt2), jnp.float32)
    c2 = jax.random.normal(kc2, (B2, C, Ts2), jnp.float32)
    mask2 = (jax.random.uniform(km2, (B2, 1, Tt2, Ts2)) > 0.2).astype(jnp.float32)

    y2 = jax.block_until_ready(module(x2, c2, mask2))
    y2_nm = jax.block_until_ready(module(x2, c2, None))
    y2_ref, _ = reference_forward(module, x2, c2, mask2)
    y2_ref_nm, _ = reference_forward(module, x2, c2, None)
    assert y2.shape == (B2, Cout, Tt2)
    assert jnp.allclose(y2, y2_ref, atol=7.5e-2, rtol=7.5e-2), "tiled masked y mismatch"
    assert jnp.allclose(y2_nm, y2_ref_nm, atol=7.5e-2, rtol=7.5e-2), "tiled no-mask y mismatch"

    print("KERNEL_OK")
</pallas_src>

<mosaic_0001>
module attributes {stable_mosaic.version = 11 : i64} {
  func.func @_mha_fused_kernel(%arg0: i32, %arg1: i32, %arg2: memref<1x32x16xf32, #tpu.memory_space<vmem>>, %arg3: memref<1x32x24xf32, #tpu.memory_space<vmem>>, %arg4: memref<32x32xbf16, #tpu.memory_space<vmem>>, %arg5: memref<32x32xbf16, #tpu.memory_space<vmem>>, %arg6: memref<32x32xbf16, #tpu.memory_space<vmem>>, %arg7: memref<32x32xbf16, #tpu.memory_space<vmem>>, %arg8: memref<32x1xf32, #tpu.memory_space<vmem>>, %arg9: memref<32x1xf32, #tpu.memory_space<vmem>>, %arg10: memref<32x1xf32, #tpu.memory_space<vmem>>, %arg11: memref<32x1xf32, #tpu.memory_space<vmem>>, %arg12: memref<1x24x16xi8, #tpu.memory_space<vmem>>, %arg13: memref<1x32x16xf32, #tpu.memory_space<vmem>>, %arg14: memref<4x8x24xbf16, #tpu.memory_space<vmem>>, %arg15: memref<4x8x24xbf16, #tpu.memory_space<vmem>>, %arg16: memref<4x8x16xf32, #tpu.memory_space<vmem>>, %arg17: memref<4x1x16xf32, #tpu.memory_space<vmem>>, %arg18: memref<4x1x16xf32, #tpu.memory_space<vmem>>) attributes {dimension_semantics = [#tpu.dimension_semantics<parallel>, #tpu.dimension_semantics<arbitrary>], iteration_bounds = array<i64: 2, 1>, scalar_prefetch = 0 : i64, scratch_operands = 5 : i64, tpu.core_type = #tpu.core_type<tc>, window_params = [{transform_indices = @transform_0, window_bounds = array<i64: 1, 32, 16>}, {transform_indices = @transform_1, window_bounds = array<i64: 1, 32, 24>}, {pipeline_mode = #tpu.pipeline_mode<synchronous>, transform_indices = @transform_2, window_bounds = array<i64: 32, 32>}, {pipeline_mode = #tpu.pipeline_mode<synchronous>, transform_indices = @transform_3, window_bounds = array<i64: 32, 32>}, {pipeline_mode = #tpu.pipeline_mode<synchronous>, transform_indices = @transform_4, window_bounds = array<i64: 32, 32>}, {pipeline_mode = #tpu.pipeline_mode<synchronous>, transform_indices = @transform_5, window_bounds = array<i64: 32, 32>}, {pipeline_mode = #tpu.pipeline_mode<synchronous>, transform_indices = @transform_6, window_bounds = array<i64: 32, 1>}, {pipeline_mode = #tpu.pipeline_mode<synchronous>, transform_indices = @transform_7, window_bounds = array<i64: 32, 1>}, {pipeline_mode = #tpu.pipeline_mode<synchronous>, transform_indices = @transform_8, window_bounds = array<i64: 32, 1>}, {pipeline_mode = #tpu.pipeline_mode<synchronous>, transform_indices = @transform_9, window_bounds = array<i64: 32, 1>}, {transform_indices = @transform_10, window_bounds = array<i64: 1, 24, 16>}, {transform_indices = @transform_11, window_bounds = array<i64: 1, 32, 16>}]} {
    %c0_i32 = arith.constant 0 : i32
    %0 = arith.cmpi eq, %arg1, %c0_i32 : i32
    %1 = arith.extui %0 : i1 to i32
    %c0_i32_0 = arith.constant 0 : i32
    %2 = arith.cmpi ne, %1, %c0_i32_0 : i32
    scf.if %2 {
      %c0_197 = arith.constant 0 : index
      %c0_198 = arith.constant 0 : index
      %c0_199 = arith.constant 0 : index
      %259 = vector.load %arg3[%c0_197, %c0_198, %c0_199] : memref<1x32x24xf32, #tpu.memory_space<vmem>>, vector<1x32x24xf32>
      %260 = vector.shape_cast %259 : vector<1x32x24xf32> to vector<32x24xf32>
      %261 = arith.truncf %260 : vector<32x24xf32> to vector<32x24xbf16>
      %c0_200 = arith.constant 0 : index
      %c0_201 = arith.constant 0 : index
      %262 = vector.load %arg5[%c0_200, %c0_201] : memref<32x32xbf16, #tpu.memory_space<vmem>>, vector<32x32xbf16>
      %cst_202 = arith.constant dense<0.000000e+00> : vector<32x24xf32>
      %263 = tpu.matmul %262, %261, %cst_202 {dimension_numbers = #tpu.dot_dimension_numbers<[1], [0], [0], [1], [0, 0, 1, 1], [], []>} : vector<32x32xbf16>, vector<32x24xbf16>, vector<32x24xf32> -> vector<32x24xf32>
      %c0_203 = arith.constant 0 : index
      %c0_204 = arith.constant 0 : index
      %264 = vector.load %arg9[%c0_203, %c0_204] : memref<32x1xf32, #tpu.memory_space<vmem>>, vector<32x1xf32>
      %265 = vector.broadcast %264 : vector<32x1xf32> to vector<32x24xf32>
      %266 = arith.addf %263, %265 : vector<32x24xf32>
      %c0_205 = arith.constant 0 : index
      %c0_206 = arith.constant 0 : index
      %267 = vector.load %arg6[%c0_205, %c0_206] : memref<32x32xbf16, #tpu.memory_space<vmem>>, vector<32x32xbf16>
      %cst_207 = arith.constant dense<0.000000e+00> : vector<32x24xf32>
      %268 = tpu.matmul %267, %261, %cst_207 {dimension_numbers = #tpu.dot_dimension_numbers<[1], [0], [0], [1], [0, 0, 1, 1], [], []>} : vector<32x32xbf16>, vector<32x24xbf16>, vector<32x24xf32> -> vector<32x24xf32>
      %c0_208 = arith.constant 0 : index
      %c0_209 = arith.constant 0 : index
      %269 = vector.load %arg10[%c0_208, %c0_209] : memref<32x1xf32, #tpu.memory_space<vmem>>, vector<32x1xf32>
      %270 = vector.broadcast %269 : vector<32x1xf32> to vector<32x24xf32>
      %271 = arith.addf %268, %270 : vector<32x24xf32>
      %272 = vector.shape_cast %266 : vector<32x24xf32> to vector<4x8x24xf32>
      %273 = arith.truncf %272 : vector<4x8x24xf32> to vector<4x8x24xbf16>
      %c0_210 = arith.constant 0 : index
      %c0_211 = arith.constant 0 : index
      %c0_212 = arith.constant 0 : index
      %274 = vector.load %arg14[%c0_210, %c0_211, %c0_212] : memref<4x8x24xbf16, #tpu.memory_space<vmem>>, vector<4x8x24xbf16>
      tpu.vector_store %arg14[%c0_210, %c0_211, %c0_212], %273 {strides = array<i32>} : memref<4x8x24xbf16, #tpu.memory_space<vmem>>, vector<4x8x24xbf16>,
      %275 = vector.shape_cast %271 : vector<32x24xf32> to vector<4x8x24xf32>
      %276 = arith.truncf %275 : vector<4x8x24xf32> to vector<4x8x24xbf16>
      %c0_213 = arith.constant 0 : index
      %c0_214 = arith.constant 0 : index
      %c0_215 = arith.constant 0 : index
      %277 = vector.load %arg15[%c0_213, %c0_214, %c0_215] : memref<4x8x24xbf16, #tpu.memory_space<vmem>>, vector<4x8x24xbf16>
      tpu.vector_store %arg15[%c0_213, %c0_214, %c0_215], %276 {strides = array<i32>} : memref<4x8x24xbf16, #tpu.memory_space<vmem>>, vector<4x8x24xbf16>,
    } else {
    }
    %c0 = arith.constant 0 : index
    %c0_1 = arith.constant 0 : index
    %c0_2 = arith.constant 0 : index
    %3 = vector.load %arg2[%c0, %c0_1, %c0_2] : memref<1x32x16xf32, #tpu.memory_space<vmem>>, vector<1x32x16xf32>
    %4 = vector.shape_cast %3 : vector<1x32x16xf32> to vector<32x16xf32>
    %5 = arith.truncf %4 : vector<32x16xf32> to vector<32x16xbf16>
    %c0_3 = arith.constant 0 : index
    %c0_4 = arith.constant 0 : index
    %6 = vector.load %arg4[%c0_3, %c0_4] : memref<32x32xbf16, #tpu.memory_space<vmem>>, vector<32x32xbf16>
    %cst = arith.constant dense<0.000000e+00> : vector<32x16xf32>
    %7 = tpu.matmul %6, %5, %cst {dimension_numbers = #tpu.dot_dimension_numbers<[1], [0], [0], [1], [0, 0, 1, 1], [], []>} : vector<32x32xbf16>, vector<32x16xbf16>, vector<32x16xf32> -> vector<32x16xf32>
    %c0_5 = arith.constant 0 : index
    %c0_6 = arith.constant 0 : index
    %8 = vector.load %arg8[%c0_5, %c0_6] : memref<32x1xf32, #tpu.memory_space<vmem>>, vector<32x1xf32>
    %9 = vector.broadcast %8 : vector<32x1xf32> to vector<32x16xf32>
    %10 = arith.addf %7, %9 : vector<32x16xf32>
    %11 = vector.shape_cast %10 : vector<32x16xf32> to vector<4x8x16xf32>
    %12 = vector.extract_strided_slice %11 {offsets = [0, 0, 0], sizes = [1, 8, 16], strides = [1, 1, 1]} : vector<4x8x16xf32> to vector<1x8x16xf32>
    %13 = vector.shape_cast %12 : vector<1x8x16xf32> to vector<8x16xf32>
    %14 = arith.truncf %13 : vector<8x16xf32> to vector<8x16xbf16>
    %cst_7 = arith.constant 0xFF800000 : f32
    %15 = vector.broadcast %cst_7 : f32 to vector<1x16xf32>
    %c0_8 = arith.constant 0 : index
    %c0_9 = arith.constant 0 : index
    %c0_10 = arith.constant 0 : index
    %16 = vector.load %arg17[%c0_8, %c0_9, %c0_10] : memref<4x1x16xf32, #tpu.memory_space<vmem>>, vector<1x1x16xf32>
    %17 = vector.shape_cast %16 : vector<1x1x16xf32> to vector<1x16xf32>
    %18 = vector.shape_cast %15 : vector<1x16xf32> to vector<1x1x16xf32>
    tpu.vector_store %arg17[%c0_8, %c0_9, %c0_10], %18 {strides = array<i32>} : memref<4x1x16xf32, #tpu.memory_space<vmem>>, vector<1x1x16xf32>,
    %cst_11 = arith.constant 0.000000e+00 : f32
    %19 = vector.broadcast %cst_11 : f32 to vector<1x16xf32>
    %c0_12 = arith.constant 0 : index
    %c0_13 = arith.constant 0 : index
    %c0_14 = arith.constant 0 : index
    %20 = vector.load %arg18[%c0_12, %c0_13, %c0_14] : memref<4x1x16xf32, #tpu.memory_space<vmem>>, vector<1x1x16xf32>
    %21 = vector.shape_cast %20 : vector<1x1x16xf32> to vector<1x16xf32>
    %22 = vector.shape_cast %19 : vector<1x16xf32> to vector<1x1x16xf32>
    tpu.vector_store %arg18[%c0_12, %c0_13, %c0_14], %22 {strides = array<i32>} : memref<4x1x16xf32, #tpu.memory_space<vmem>>, vector<1x1x16xf32>,
    %cst_15 = arith.constant 0.000000e+00 : f32
    %23 = vector.broadcast %cst_15 : f32 to vector<8x16xf32>
    %c0_16 = arith.constant 0 : index
    %c0_17 = arith.constant 0 : index
    %c0_18 = arith.constant 0 : index
    %24 = vector.load %arg16[%c0_16, %c0_17, %c0_18] : memref<4x8x16xf32, #tpu.memory_space<vmem>>, vector<1x8x16xf32>
    %25 = vector.shape_cast %24 : vector<1x8x16xf32> to vector<8x16xf32>
    %26 = vector.shape_cast %23 : vector<8x16xf32> to vector<1x8x16xf32>
    tpu.vector_store %arg16[%c0_16, %c0_17, %c0_18], %26 {strides = array<i32>} : memref<4x8x16xf32, #tpu.memory_space<vmem>>, vector<1x8x16xf32>,
    %c0_19 = arith.constant 0 : index
    %c0_20 = arith.constant 0 : index
    %c0_21 = arith.constant 0 : index
    %27 = vector.load %arg14[%c0_19, %c0_20, %c0_21] : memref<4x8x24xbf16, #tpu.memory_space<vmem>>, vector<1x8x24xbf16>
    %28 = vector.shape_cast %27 : vector<1x8x24xbf16> to vector<8x24xbf16>
    %c0_22 = arith.constant 0 : index
    %c0_23 = arith.constant 0 : index
    %c0_24 = arith.constant 0 : index
    %29 = vector.load %arg15[%c0_22, %c0_23, %c0_24] : memref<4x8x24xbf16, #tpu.memory_space<vmem>>, vector<1x8x24xbf16>
    %30 = vector.shape_cast %29 : vector<1x8x24xbf16> to vector<8x24xbf16>
    %cst_25 = arith.constant dense<0.000000e+00> : vector<24x16xf32>
    %31 = tpu.matmul %28, %14, %cst_25 {dimension_numbers = #tpu.dot_dimension_numbers<[0], [0], [1], [1], [0, 1, 1, 1], [], []>} : vector<8x24xbf16>, vector<8x16xbf16>, vector<24x16xf32> -> vector<24x16xf32>
    %c0_26 = arith.constant 0 : index
    %c0_27 = arith.constant 0 : index
    %c0_28 = arith.constant 0 : index
    %32 = vector.load %arg12[%c0_26, %c0_27, %c0_28] : memref<1x24x16xi8, #tpu.memory_space<vmem>>, vector<1x24x16xi8>
    %33 = vector.shape_cast %32 : vector<1x24x16xi8> to vector<24x16xi8>
    %c0_i8 = arith.constant 0 : i8
    %34 = vector.broadcast %c0_i8 : i8 to vector<24x16xi8>
    %35 = arith.cmpi ne, %33, %34 : vector<24x16xi8>
    %cst_29 = arith.constant -1.000000e+04 : f32
    %36 = vector.broadcast %cst_29 : f32 to vector<24x16xf32>
    %37 = arith.select %35, %31, %36 : vector<24x16xi1>, vector<24x16xf32>
    %c0_30 = arith.constant 0 : index
    %c0_31 = arith.constant 0 : index
    %c0_32 = arith.constant 0 : index
    %38 = vector.load %arg17[%c0_30, %c0_31, %c0_32] : memref<4x1x16xf32, #tpu.memory_space<vmem>>, vector<1x1x16xf32>
    %39 = vector.shape_cast %38 : vector<1x1x16xf32> to vector<1x16xf32>
    %cst_33 = arith.constant dense<0xFF800000> : vector<16xf32>
    %40 = vector.multi_reduction <maximumf>, %37, %cst_33 [0] : vector<24x16xf32> to vector<16xf32>
    %41 = vector.shape_cast %40 : vector<16xf32> to vector<1x16xf32>
    %42 = arith.maximumf %39, %41 : vector<1x16xf32>
    %43 = arith.subf %39, %42 : vector<1x16xf32>
    %44 = math.exp %43 : vector<1x16xf32>
    %45 = vector.broadcast %42 : vector<1x16xf32> to vector<24x16xf32>
    %46 = arith.subf %37, %45 : vector<24x16xf32>
    %47 = math.exp %46 : vector<24x16xf32>
    %c0_34 = arith.constant 0 : index
    %c0_35 = arith.constant 0 : index
    %c0_36 = arith.constant 0 : index
    %48 = vector.load %arg18[%c0_34, %c0_35, %c0_36] : memref<4x1x16xf32, #tpu.memory_space<vmem>>, vector<1x1x16xf32>
    %49 = vector.shape_cast %48 : vector<1x1x16xf32> to vector<1x16xf32>
    %50 = arith.mulf %44, %49 : vector<1x16xf32>
    %cst_37 = arith.constant dense<0.000000e+00> : vector<16xf32>
    %51 = vector.multi_reduction <add>, %47, %cst_37 [0] : vector<24x16xf32> to vector<16xf32>
    %52 = vector.shape_cast %51 : vector<16xf32> to vector<1x16xf32>
    %53 = arith.addf %50, %52 : vector<1x16xf32>
    %c0_38 = arith.constant 0 : index
    %c0_39 = arith.constant 0 : index
    %c0_40 = arith.constant 0 : index
    %54 = vector.load %arg18[%c0_38, %c0_39, %c0_40] : memref<4x1x16xf32, #tpu.memory_space<vmem>>, vector<1x1x16xf32>
    %55 = vector.shape_cast %54 : vector<1x1x16xf32> to vector<1x16xf32>
    %56 = vector.shape_cast %53 : vector<1x16xf32> to vector<1x1x16xf32>
    tpu.vector_store %arg18[%c0_38, %c0_39, %c0_40], %56 {strides = array<i32>} : memref<4x1x16xf32, #tpu.memory_space<vmem>>, vector<1x1x16xf32>,
    %c0_41 = arith.constant 0 : index
    %c0_42 = arith.constant 0 : index
    %c0_43 = arith.constant 0 : index
    %57 = vector.load %arg16[%c0_41, %c0_42, %c0_43] : memref<4x8x16xf32, #tpu.memory_space<vmem>>, vector<1x8x16xf32>
    %58 = vector.shape_cast %57 : vector<1x8x16xf32> to vector<8x16xf32>
    %59 = vector.broadcast %44 : vector<1x16xf32> to vector<8x16xf32>
    %60 = arith.mulf %59, %58 : vector<8x16xf32>
    %61 = arith.truncf %47 : vector<24x16xf32> to vector<24x16xbf16>
    %cst_44 = arith.constant dense<0.000000e+00> : vector<8x16xf32>
    %62 = tpu.matmul %30, %61, %cst_44 {dimension_numbers = #tpu.dot_dimension_numbers<[1], [0], [0], [1], [0, 0, 1, 1], [], []>} : vector<8x24xbf16>, vector<24x16xbf16>, vector<8x16xf32> -> vector<8x16xf32>
    %63 = arith.addf %60, %62 : vector<8x16xf32>
    %c0_45 = arith.constant 0 : index
    %c0_46 = arith.constant 0 : index
    %c0_47 = arith.constant 0 : index
    %64 = vector.load %arg16[%c0_45, %c0_46, %c0_47] : memref<4x8x16xf32, #tpu.memory_space<vmem>>, vector<1x8x16xf32>
    %65 = vector.shape_cast %64 : vector<1x8x16xf32> to vector<8x16xf32>
    %66 = vector.shape_cast %63 : vector<8x16xf32> to vector<1x8x16xf32>
    tpu.vector_store %arg16[%c0_45, %c0_46, %c0_47], %66 {strides = array<i32>} : memref<4x8x16xf32, #tpu.memory_space<vmem>>, vector<1x8x16xf32>,
    %c0_48 = arith.constant 0 : index
    %c0_49 = arith.constant 0 : index
    %c0_50 = arith.constant 0 : index
    %67 = vector.load %arg17[%c0_48, %c0_49, %c0_50] : memref<4x1x16xf32, #tpu.memory_space<vmem>>, vector<1x1x16xf32>
    %68 = vector.shape_cast %67 : vector<1x1x16xf32> to vector<1x16xf32>
    %69 = vector.shape_cast %42 : vector<1x16xf32> to vector<1x1x16xf32>
    tpu.vector_store %arg17[%c0_48, %c0_49, %c0_50], %69 {strides = array<i32>} : memref<4x1x16xf32, #tpu.memory_space<vmem>>, vector<1x1x16xf32>,
    %70 = vector.extract_strided_slice %11 {offsets = [1, 0, 0], sizes = [1, 8, 16], strides = [1, 1, 1]} : vector<4x8x16xf32> to vector<1x8x16xf32>
    %71 = vector.shape_cast %70 : vector<1x8x16xf32> to vector<8x16xf32>
    %72 = arith.truncf %71 : vector<8x16xf32> to vector<8x16xbf16>
    %cst_51 = arith.constant 0xFF800000 : f32
    %73 = vector.broadcast %cst_51 : f32 to vector<1x16xf32>
    %c1 = arith.constant 1 : index
    %c0_52 = arith.constant 0 : index
    %c0_53 = arith.constant 0 : index
    %74 = vector.load %arg17[%c1, %c0_52, %c0_53] : memref<4x1x16xf32, #tpu.memory_space<vmem>>, vector<1x1x16xf32>
    %75 = vector.shape_cast %74 : vector<1x1x16xf32> to vector<1x16xf32>
    %76 = vector.shape_cast %73 : vector<1x16xf32> to vector<1x1x16xf32>
    tpu.vector_store %arg17[%c1, %c0_52, %c0_53], %76 {strides = array<i32>} : memref<4x1x16xf32, #tpu.memory_space<vmem>>, vector<1x1x16xf32>,
    %cst_54 = arith.constant 0.000000e+00 : f32
    %77 = vector.broadcast %cst_54 : f32 to vector<1x16xf32>
    %c1_55 = arith.constant 1 : index
    %c0_56 = arith.constant 0 : index
    %c0_57 = arith.constant 0 : index
    %78 = vector.load %arg18[%c1_55, %c0_56, %c0_57] : memref<4x1x16xf32, #tpu.memory_space<vmem>>, vector<1x1x16xf32>
    %79 = vector.shape_cast %78 : vector<1x1x16xf32> to vector<1x16xf32>
    %80 = vector.shape_cast %77 : vector<1x16xf32> to vector<1x1x16xf32>
    tpu.vector_store %arg18[%c1_55, %c0_56, %c0_57], %80 {strides = array<i32>} : memref<4x1x16xf32, #tpu.memory_space<vmem>>, vector<1x1x16xf32>,
    %cst_58 = arith.constant 0.000000e+00 : f32
    %81 = vector.broadcast %cst_58 : f32 to vector<8x16xf32>
    %c1_59 = arith.constant 1 : index
    %c0_60 = arith.constant 0 : index
    %c0_61 = arith.constant 0 : index
    %82 = vector.load %arg16[%c1_59, %c0_60, %c0_61] : memref<4x8x16xf32, #tpu.memory_space<vmem>>, vector<1x8x16xf32>
    %83 = vector.shape_cast %82 : vector<1x8x16xf32> to vector<8x16xf32>
    %84 = vector.shape_cast %81 : vector<8x16xf32> to vector<1x8x16xf32>
    tpu.vector_store %arg16[%c1_59, %c0_60, %c0_61], %84 {strides = array<i32>} : memref<4x8x16xf32, #tpu.memory_space<vmem>>, vector<1x8x16xf32>,
    %c1_62 = arith.constant 1 : index
    %c0_63 = arith.constant 0 : index
    %c0_64 = arith.constant 0 : index
    %85 = vector.load %arg14[%c1_62, %c0_63, %c0_64] : memref<4x8x24xbf16, #tpu.memory_space<vmem>>, vector<1x8x24xbf16>
    %86 = vector.shape_cast %85 : vector<1x8x24xbf16> to vector<8x24xbf16>
    %c1_65 = arith.constant 1 : index
    %c0_66 = arith.constant 0 : index
    %c0_67 = arith.constant 0 : index
    %87 = vector.load %arg15[%c1_65, %c0_66, %c0_67] : memref<4x8x24xbf16, #tpu.memory_space<vmem>>, vector<1x8x24xbf16>
    %88 = vector.shape_cast %87 : vector<1x8x24xbf16> to vector<8x24xbf16>
    %cst_68 = arith.constant dense<0.000000e+00> : vector<24x16xf32>
    %89 = tpu.matmul %86, %72, %cst_68 {dimension_numbers = #tpu.dot_dimension_numbers<[0], [0], [1], [1], [0, 1, 1, 1], [], []>} : vector<8x24xbf16>, vector<8x16xbf16>, vector<24x16xf32> -> vector<24x16xf32>
    %c0_69 = arith.constant 0 : index
    %c0_70 = arith.constant 0 : index
    %c0_71 = arith.constant 0 : index
    %90 = vector.load %arg12[%c0_69, %c0_70, %c0_71] : memref<1x24x16xi8, #tpu.memory_space<vmem>>, vector<1x24x16xi8>
    %91 = vector.shape_cast %90 : vector<1x24x16xi8> to vector<24x16xi8>
    %c0_i8_72 = arith.constant 0 : i8
    %92 = vector.broadcast %c0_i8_72 : i8 to vector<24x16xi8>
    %93 = arith.cmpi ne, %91, %92 : vector<24x16xi8>
    %cst_73 = arith.constant -1.000000e+04 : f32
    %94 = vector.broadcast %cst_73 : f32 to vector<24x16xf32>
    %95 = arith.select %93, %89, %94 : vector<24x16xi1>, vector<24x16xf32>
    %c1_74 = arith.constant 1 : index
    %c0_75 = arith.constant 0 : index
    %c0_76 = arith.constant 0 : index
    %96 = vector.load %arg17[%c1_74, %c0_75, %c0_76] : memref<4x1x16xf32, #tpu.memory_space<vmem>>, vector<1x1x16xf32>
    %97 = vector.shape_cast %96 : vector<1x1x16xf32> to vector<1x16xf32>
    %cst_77 = arith.constant dense<0xFF800000> : vector<16xf32>
    %98 = vector.multi_reduction <maximumf>, %95, %cst_77 [0] : vector<24x16xf32> to vector<16xf32>
    %99 = vector.shape_cast %98 : vector<16xf32> to vector<1x16xf32>
    %100 = arith.maximumf %97, %99 : vector<1x16xf32>
    %101 = arith.subf %97, %100 : vector<1x16xf32>
    %102 = math.exp %101 : vector<1x16xf32>
    %103 = vector.broadcast %100 : vector<1x16xf32> to vector<24x16xf32>
    %104 = arith.subf %95, %103 : vector<24x16xf32>
    %105 = math.exp %104 : vector<24x16xf32>
    %c1_78 = arith.constant 1 : index
    %c0_79 = arith.constant 0 : index
    %c0_80 = arith.constant 0 : index
    %106 = vector.load %arg18[%c1_78, %c0_79, %c0_80] : memref<4x1x16xf32, #tpu.memory_space<vmem>>, vector<1x1x16xf32>
    %107 = vector.shape_cast %106 : vector<1x1x16xf32> to vector<1x16xf32>
    %108 = arith.mulf %102, %107 : vector<1x16xf32>
    %cst_81 = arith.constant dense<0.000000e+00> : vector<16xf32>
    %109 = vector.multi_reduction <add>, %105, %cst_81 [0] : vector<24x16xf32> to vector<16xf32>
    %110 = vector.shape_cast %109 : vector<16xf32> to vector<1x16xf32>
    %111 = arith.addf %108, %110 : vector<1x16xf32>
    %c1_82 = arith.constant 1 : index
    %c0_83 = arith.constant 0 : index
    %c0_84 = arith.constant 0 : index
    %112 = vector.load %arg18[%c1_82, %c0_83, %c0_84] : memref<4x1x16xf32, #tpu.memory_space<vmem>>, vector<1x1x16xf32>
    %113 = vector.shape_cast %112 : vector<1x1x16xf32> to vector<1x16xf32>
    %114 = vector.shape_cast %111 : vector<1x16xf32> to vector<1x1x16xf32>
    tpu.vector_store %arg18[%c1_82, %c0_83, %c0_84], %114 {strides = array<i32>} : memref<4x1x16xf32, #tpu.memory_space<vmem>>, vector<1x1x16xf32>,
    %c1_85 = arith.constant 1 : index
    %c0_86 = arith.constant 0 : index
    %c0_87 = arith.constant 0 : index
    %115 = vector.load %arg16[%c1_85, %c0_86, %c0_87] : memref<4x8x16xf32, #tpu.memory_space<vmem>>, vector<1x8x16xf32>
    %116 = vector.shape_cast %115 : vector<1x8x16xf32> to vector<8x16xf32>
    %117 = vector.broadcast %102 : vector<1x16xf32> to vector<8x16xf32>
    %118 = arith.mulf %117, %116 : vector<8x16xf32>
    %119 = arith.truncf %105 : vector<24x16xf32> to vector<24x16xbf16>
    %cst_88 = arith.constant dense<0.000000e+00> : vector<8x16xf32>
    %120 = tpu.matmul %88, %119, %cst_88 {dimension_numbers = #tpu.dot_dimension_numbers<[1], [0], [0], [1], [0, 0, 1, 1], [], []>} : vector<8x24xbf16>, vector<24x16xbf16>, vector<8x16xf32> -> vector<8x16xf32>
    %121 = arith.addf %118, %120 : vector<8x16xf32>
    %c1_89 = arith.constant 1 : index
    %c0_90 = arith.constant 0 : index
    %c0_91 = arith.constant 0 : index
    %122 = vector.load %arg16[%c1_89, %c0_90, %c0_91] : memref<4x8x16xf32, #tpu.memory_space<vmem>>, vector<1x8x16xf32>
    %123 = vector.shape_cast %122 : vector<1x8x16xf32> to vector<8x16xf32>
    %124 = vector.shape_cast %121 : vector<8x16xf32> to vector<1x8x16xf32>
    tpu.vector_store %arg16[%c1_89, %c0_90, %c0_91], %124 {strides = array<i32>} : memref<4x8x16xf32, #tpu.memory_space<vmem>>, vector<1x8x16xf32>,
    %c1_92 = arith.constant 1 : index
    %c0_93 = arith.constant 0 : index
    %c0_94 = arith.constant 0 : index
    %125 = vector.load %arg17[%c1_92, %c0_93, %c0_94] : memref<4x1x16xf32, #tpu.memory_space<vmem>>, vector<1x1x16xf32>
    %126 = vector.shape_cast %125 : vector<1x1x16xf32> to vector<1x16xf32>
    %127 = vector.shape_cast %100 : vector<1x16xf32> to vector<1x1x16xf32>
    tpu.vector_store %arg17[%c1_92, %c0_93, %c0_94], %127 {strides = array<i32>} : memref<4x1x16xf32, #tpu.memory_space<vmem>>, vector<1x1x16xf32>,
    %128 = vector.extract_strided_slice %11 {offsets = [2, 0, 0], sizes = [1, 8, 16], strides = [1, 1, 1]} : vector<4x8x16xf32> to vector<1x8x16xf32>
    %129 = vector.shape_cast %128 : vector<1x8x16xf32> to vector<8x16xf32>
    %130 = arith.truncf %129 : vector<8x16xf32> to vector<8x16xbf16>
    %cst_95 = arith.constant 0xFF800000 : f32
    %131 = vector.broadcast %cst_95 : f32 to vector<1x16xf32>
    %c2 = arith.constant 2 : index
    %c0_96 = arith.constant 0 : index
    %c0_97 = arith.constant 0 : index
    %132 = vector.load %arg17[%c2, %c0_96, %c0_97] : memref<4x1x16xf32, #tpu.memory_space<vmem>>, vector<1x1x16xf32>
    %133 = vector.shape_cast %132 : vector<1x1x16xf32> to vector<1x16xf32>
    %134 = vector.shape_cast %131 : vector<1x16xf32> to vector<1x1x16xf32>
    tpu.vector_store %arg17[%c2, %c0_96, %c0_97], %134 {strides = array<i32>} : memref<4x1x16xf32, #tpu.memory_space<vmem>>, vector<1x1x16xf32>,
    %cst_98 = arith.constant 0.000000e+00 : f32
    %135 = vector.broadcast %cst_98 : f32 to vector<1x16xf32>
    %c2_99 = arith.constant 2 : index
    %c0_100 = arith.constant 0 : index
    %c0_101 = arith.constant 0 : index
    %136 = vector.load %arg18[%c2_99, %c0_100, %c0_101] : memref<4x1x16xf32, #tpu.memory_space<vmem>>, vector<1x1x16xf32>
    %137 = vector.shape_cast %136 : vector<1x1x16xf32> to vector<1x16xf32>
    %138 = vector.shape_cast %135 : vector<1x16xf32> to vector<1x1x16xf32>
    tpu.vector_store %arg18[%c2_99, %c0_100, %c0_101], %138 {strides = array<i32>} : memref<4x1x16xf32, #tpu.memory_space<vmem>>, vector<1x1x16xf32>,
    %cst_102 = arith.constant 0.000000e+00 : f32
    %139 = vector.broadcast %cst_102 : f32 to vector<8x16xf32>
    %c2_103 = arith.constant 2 : index
    %c0_104 = arith.constant 0 : index
    %c0_105 = arith.constant 0 : index
    %140 = vector.load %arg16[%c2_103, %c0_104, %c0_105] : memref<4x8x16xf32, #tpu.memory_space<vmem>>, vector<1x8x16xf32>
    %141 = vector.shape_cast %140 : vector<1x8x16xf32> to vector<8x16xf32>
    %142 = vector.shape_cast %139 : vector<8x16xf32> to vector<1x8x16xf32>
    tpu.vector_store %arg16[%c2_103, %c0_104, %c0_105], %142 {strides = array<i32>} : memref<4x8x16xf32, #tpu.memory_space<vmem>>, vector<1x8x16xf32>,
    %c2_106 = arith.constant 2 : index
    %c0_107 = arith.constant 0 : index
    %c0_108 = arith.constant 0 : index
    %143 = vector.load %arg14[%c2_106, %c0_107, %c0_108] : memref<4x8x24xbf16, #tpu.memory_space<vmem>>, vector<1x8x24xbf16>
    %144 = vector.shape_cast %143 : vector<1x8x24xbf16> to vector<8x24xbf16>
    %c2_109 = arith.constant 2 : index
    %c0_110 = arith.constant 0 : index
    %c0_111 = arith.constant 0 : index
    %145 = vector.load %arg15[%c2_109, %c0_110, %c0_111] : memref<4x8x24xbf16, #tpu.memory_space<vmem>>, vector<1x8x24xbf16>
    %146 = vector.shape_cast %145 : vector<1x8x24xbf16> to vector<8x24xbf16>
    %cst_112 = arith.constant dense<0.000000e+00> : vector<24x16xf32>
    %147 = tpu.matmul %144, %130, %cst_112 {dimension_numbers = #tpu.dot_dimension_numbers<[0], [0], [1], [1], [0, 1, 1, 1], [], []>} : vector<8x24xbf16>, vector<8x16xbf16>, vector<24x16xf32> -> vector<24x16xf32>
    %c0_113 = arith.constant 0 : index
    %c0_114 = arith.constant 0 : index
    %c0_115 = arith.constant 0 : index
    %148 = vector.load %arg12[%c0_113, %c0_114, %c0_115] : memref<1x24x16xi8, #tpu.memory_space<vmem>>, vector<1x24x16xi8>
    %149 = vector.shape_cast %148 : vector<1x24x16xi8> to vector<24x16xi8>
    %c0_i8_116 = arith.constant 0 : i8
    %150 = vector.broadcast %c0_i8_116 : i8 to vector<24x16xi8>
    %151 = arith.cmpi ne, %149, %150 : vector<24x16xi8>
    %cst_117 = arith.constant -1.000000e+04 : f32
    %152 = vector.broadcast %cst_117 : f32 to vector<24x16xf32>
    %153 = arith.select %151, %147, %152 : vector<24x16xi1>, vector<24x16xf32>
    %c2_118 = arith.constant 2 : index
    %c0_119 = arith.constant 0 : index
    %c0_120 = arith.constant 0 : index
    %154 = vector.load %arg17[%c2_118, %c0_119, %c0_120] : memref<4x1x16xf32, #tpu.memory_space<vmem>>, vector<1x1x16xf32>
    %155 = vector.shape_cast %154 : vector<1x1x16xf32> to vector<1x16xf32>
    %cst_121 = arith.constant dense<0xFF800000> : vector<16xf32>
    %156 = vector.multi_reduction <maximumf>, %153, %cst_121 [0] : vector<24x16xf32> to vector<16xf32>
    %157 = vector.shape_cast %156 : vector<16xf32> to vector<1x16xf32>
    %158 = arith.maximumf %155, %157 : vector<1x16xf32>
    %159 = arith.subf %155, %158 : vector<1x16xf32>
    %160 = math.exp %159 : vector<1x16xf32>
    %161 = vector.broadcast %158 : vector<1x16xf32> to vector<24x16xf32>
    %162 = arith.subf %153, %161 : vector<24x16xf32>
    %163 = math.exp %162 : vector<24x16xf32>
    %c2_122 = arith.constant 2 : index
    %c0_123 = arith.constant 0 : index
    %c0_124 = arith.constant 0 : index
    %164 = vector.load %arg18[%c2_122, %c0_123, %c0_124] : memref<4x1x16xf32, #tpu.memory_space<vmem>>, vector<1x1x16xf32>
    %165 = vector.shape_cast %164 : vector<1x1x16xf32> to vector<1x16xf32>
    %166 = arith.mulf %160, %165 : vector<1x16xf32>
    %cst_125 = arith.constant dense<0.000000e+00> : vector<16xf32>
    %167 = vector.multi_reduction <add>, %163, %cst_125 [0] : vector<24x16xf32> to vector<16xf32>
    %168 = vector.shape_cast %167 : vector<16xf32> to vector<1x16xf32>
    %169 = arith.addf %166, %168 : vector<1x16xf32>
    %c2_126 = arith.constant 2 : index
    %c0_127 = arith.constant 0 : index
    %c0_128 = arith.constant 0 : index
    %170 = vector.load %arg18[%c2_126, %c0_127, %c0_128] : memref<4x1x16xf32, #tpu.memory_space<vmem>>, vector<1x1x16xf32>
    %171 = vector.shape_cast %170 : vector<1x1x16xf32> to vector<1x16xf32>
    %172 = vector.shape_cast %169 : vector<1x16xf32> to vector<1x1x16xf32>
    tpu.vector_store %arg18[%c2_126, %c0_127, %c0_128], %172 {strides = array<i32>} : memref<4x1x16xf32, #tpu.memory_space<vmem>>, vector<1x1x16xf32>,
    %c2_129 = arith.constant 2 : index
    %c0_130 = arith.constant 0 : index
    %c0_131 = arith.constant 0 : index
    %173 = vector.load %arg16[%c2_129, %c0_130, %c0_131] : memref<4x8x16xf32, #tpu.memory_space<vmem>>, vector<1x8x16xf32>
    %174 = vector.shape_cast %173 : vector<1x8x16xf32> to vector<8x16xf32>
    %175 = vector.broadcast %160 : vector<1x16xf32> to vector<8x16xf32>
    %176 = arith.mulf %175, %174 : vector<8x16xf32>
    %177 = arith.truncf %163 : vector<24x16xf32> to vector<24x16xbf16>
    %cst_132 = arith.constant dense<0.000000e+00> : vector<8x16xf32>
    %178 = tpu.matmul %146, %177, %cst_132 {dimension_numbers = #tpu.dot_dimension_numbers<[1], [0], [0], [1], [0, 0, 1, 1], [], []>} : vector<8x24xbf16>, vector<24x16xbf16>, vector<8x16xf32> -> vector<8x16xf32>
    %179 = arith.addf %176, %178 : vector<8x16xf32>
    %c2_133 = arith.constant 2 : index
    %c0_134 = arith.constant 0 : index
    %c0_135 = arith.constant 0 : index
    %180 = vector.load %arg16[%c2_133, %c0_134, %c0_135] : memref<4x8x16xf32, #tpu.memory_space<vmem>>, vector<1x8x16xf32>
    %181 = vector.shape_cast %180 : vector<1x8x16xf32> to vector<8x16xf32>
    %182 = vector.shape_cast %179 : vector<8x16xf32> to vector<1x8x16xf32>
    tpu.vector_store %arg16[%c2_133, %c0_134, %c0_135], %182 {strides = array<i32>} : memref<4x8x16xf32, #tpu.memory_space<vmem>>, vector<1x8x16xf32>,
    %c2_136 = arith.constant 2 : index
    %c0_137 = arith.constant 0 : index
    %c0_138 = arith.constant 0 : index
    %183 = vector.load %arg17[%c2_136, %c0_137, %c0_138] : memref<4x1x16xf32, #tpu.memory_space<vmem>>, vector<1x1x16xf32>
    %184 = vector.shape_cast %183 : vector<1x1x16xf32> to vector<1x16xf32>
    %185 = vector.shape_cast %158 : vector<1x16xf32> to vector<1x1x16xf32>
    tpu.vector_store %arg17[%c2_136, %c0_137, %c0_138], %185 {strides = array<i32>} : memref<4x1x16xf32, #tpu.memory_space<vmem>>, vector<1x1x16xf32>,
    %186 = vector.extract_strided_slice %11 {offsets = [3, 0, 0], sizes = [1, 8, 16], strides = [1, 1, 1]} : vector<4x8x16xf32> to vector<1x8x16xf32>
    %187 = vector.shape_cast %186 : vector<1x8x16xf32> to vector<8x16xf32>
    %188 = arith.truncf %187 : vector<8x16xf32> to vector<8x16xbf16>
    %cst_139 = arith.constant 0xFF800000 : f32
    %189 = vector.broadcast %cst_139 : f32 to vector<1x16xf32>
    %c3 = arith.constant 3 : index
    %c0_140 = arith.constant 0 : index
    %c0_141 = arith.constant 0 : index
    %190 = vector.load %arg17[%c3, %c0_140, %c0_141] : memref<4x1x16xf32, #tpu.memory_space<vmem>>, vector<1x1x16xf32>
    %191 = vector.shape_cast %190 : vector<1x1x16xf32> to vector<1x16xf32>
    %192 = vector.shape_cast %189 : vector<1x16xf32> to vector<1x1x16xf32>
    tpu.vector_store %arg17[%c3, %c0_140, %c0_141], %192 {strides = array<i32>} : memref<4x1x16xf32, #tpu.memory_space<vmem>>, vector<1x1x16xf32>,
    %cst_142 = arith.constant 0.000000e+00 : f32
    %193 = vector.broadcast %cst_142 : f32 to vector<1x16xf32>
    %c3_143 = arith.constant 3 : index
    %c0_144 = arith.constant 0 : index
    %c0_145 = arith.constant 0 : index
    %194 = vector.load %arg18[%c3_143, %c0_144, %c0_145] : memref<4x1x16xf32, #tpu.memory_space<vmem>>, vector<1x1x16xf32>
    %195 = vector.shape_cast %194 : vector<1x1x16xf32> to vector<1x16xf32>
    %196 = vector.shape_cast %193 : vector<1x16xf32> to vector<1x1x16xf32>
    tpu.vector_store %arg18[%c3_143, %c0_144, %c0_145], %196 {strides = array<i32>} : memref<4x1x16xf32, #tpu.memory_space<vmem>>, vector<1x1x16xf32>,
    %cst_146 = arith.constant 0.000000e+00 : f32
    %197 = vector.broadcast %cst_146 : f32 to vector<8x16xf32>
    %c3_147 = arith.constant 3 : index
    %c0_148 = arith.constant 0 : index
    %c0_149 = arith.constant 0 : index
    %198 = vector.load %arg16[%c3_147, %c0_148, %c0_149] : memref<4x8x16xf32, #tpu.memory_space<vmem>>, vector<1x8x16xf32>
    %199 = vector.shape_cast %198 : vector<1x8x16xf32> to vector<8x16xf32>
    %200 = vector.shape_cast %197 : vector<8x16xf32> to vector<1x8x16xf32>
    tpu.vector_store %arg16[%c3_147, %c0_148, %c0_149], %200 {strides = array<i32>} : memref<4x8x16xf32, #tpu.memory_space<vmem>>, vector<1x8x16xf32>,
    %c3_150 = arith.constant 3 : index
    %c0_151 = arith.constant 0 : index
    %c0_152 = arith.constant 0 : index
    %201 = vector.load %arg14[%c3_150, %c0_151, %c0_152] : memref<4x8x24xbf16, #tpu.memory_space<vmem>>, vector<1x8x24xbf16>
    %202 = vector.shape_cast %201 : vector<1x8x24xbf16> to vector<8x24xbf16>
    %c3_153 = arith.constant 3 : index
    %c0_154 = arith.constant 0 : index
    %c0_155 = arith.constant 0 : index
    %203 = vector.load %arg15[%c3_153, %c0_154, %c0_155] : memref<4x8x24xbf16, #tpu.memory_space<vmem>>, vector<1x8x24xbf16>
    %204 = vector.shape_cast %203 : vector<1x8x24xbf16> to vector<8x24xbf16>
    %cst_156 = arith.constant dense<0.000000e+00> : vector<24x16xf32>
    %205 = tpu.matmul %202, %188, %cst_156 {dimension_numbers = #tpu.dot_dimension_numbers<[0], [0], [1], [1], [0, 1, 1, 1], [], []>} : vector<8x24xbf16>, vector<8x16xbf16>, vector<24x16xf32> -> vector<24x16xf32>
    %c0_157 = arith.constant 0 : index
    %c0_158 = arith.constant 0 : index
    %c0_159 = arith.constant 0 : index
    %206 = vector.load %arg12[%c0_157, %c0_158, %c0_159] : memref<1x24x16xi8, #tpu.memory_space<vmem>>, vector<1x24x16xi8>
    %207 = vector.shape_cast %206 : vector<1x24x16xi8> to vector<24x16xi8>
    %c0_i8_160 = arith.constant 0 : i8
    %208 = vector.broadcast %c0_i8_160 : i8 to vector<24x16xi8>
    %209 = arith.cmpi ne, %207, %208 : vector<24x16xi8>
    %cst_161 = arith.constant -1.000000e+04 : f32
    %210 = vector.broadcast %cst_161 : f32 to vector<24x16xf32>
    %211 = arith.select %209, %205, %210 : vector<24x16xi1>, vector<24x16xf32>
    %c3_162 = arith.constant 3 : index
    %c0_163 = arith.constant 0 : index
    %c0_164 = arith.constant 0 : index
    %212 = vector.load %arg17[%c3_162, %c0_163, %c0_164] : memref<4x1x16xf32, #tpu.memory_space<vmem>>, vector<1x1x16xf32>
    %213 = vector.shape_cast %212 : vector<1x1x16xf32> to vector<1x16xf32>
    %cst_165 = arith.constant dense<0xFF800000> : vector<16xf32>
    %214 = vector.multi_reduction <maximumf>, %211, %cst_165 [0] : vector<24x16xf32> to vector<16xf32>
    %215 = vector.shape_cast %214 : vector<16xf32> to vector<1x16xf32>
    %216 = arith.maximumf %213, %215 : vector<1x16xf32>
    %217 = arith.subf %213, %216 : vector<1x16xf32>
    %218 = math.exp %217 : vector<1x16xf32>
    %219 = vector.broadcast %216 : vector<1x16xf32> to vector<24x16xf32>
    %220 = arith.subf %211, %219 : vector<24x16xf32>
    %221 = math.exp %220 : vector<24x16xf32>
    %c3_166 = arith.constant 3 : index
    %c0_167 = arith.constant 0 : index
    %c0_168 = arith.constant 0 : index
    %222 = vector.load %arg18[%c3_166, %c0_167, %c0_168] : memref<4x1x16xf32, #tpu.memory_space<vmem>>, vector<1x1x16xf32>
    %223 = vector.shape_cast %222 : vector<1x1x16xf32> to vector<1x16xf32>
    %224 = arith.mulf %218, %223 : vector<1x16xf32>
    %cst_169 = arith.constant dense<0.000000e+00> : vector<16xf32>
    %225 = vector.multi_reduction <add>, %221, %cst_169 [0] : vector<24x16xf32> to vector<16xf32>
    %226 = vector.shape_cast %225 : vector<16xf32> to vector<1x16xf32>
    %227 = arith.addf %224, %226 : vector<1x16xf32>
    %c3_170 = arith.constant 3 : index
    %c0_171 = arith.constant 0 : index
    %c0_172 = arith.constant 0 : index
    %228 = vector.load %arg18[%c3_170, %c0_171, %c0_172] : memref<4x1x16xf32, #tpu.memory_space<vmem>>, vector<1x1x16xf32>
    %229 = vector.shape_cast %228 : vector<1x1x16xf32> to vector<1x16xf32>
    %230 = vector.shape_cast %227 : vector<1x16xf32> to vector<1x1x16xf32>
    tpu.vector_store %arg18[%c3_170, %c0_171, %c0_172], %230 {strides = array<i32>} : memref<4x1x16xf32, #tpu.memory_space<vmem>>, vector<1x1x16xf32>,
    %c3_173 = arith.constant 3 : index
    %c0_174 = arith.constant 0 : index
    %c0_175 = arith.constant 0 : index
    %231 = vector.load %arg16[%c3_173, %c0_174, %c0_175] : memref<4x8x16xf32, #tpu.memory_space<vmem>>, vector<1x8x16xf32>
    %232 = vector.shape_cast %231 : vector<1x8x16xf32> to vector<8x16xf32>
    %233 = vector.broadcast %218 : vector<1x16xf32> to vector<8x16xf32>
    %234 = arith.mulf %233, %232 : vector<8x16xf32>
    %235 = arith.truncf %221 : vector<24x16xf32> to vector<24x16xbf16>
    %cst_176 = arith.constant dense<0.000000e+00> : vector<8x16xf32>
    %236 = tpu.matmul %204, %235, %cst_176 {dimension_numbers = #tpu.dot_dimension_numbers<[1], [0], [0], [1], [0, 0, 1, 1], [], []>} : vector<8x24xbf16>, vector<24x16xbf16>, vector<8x16xf32> -> vector<8x16xf32>
    %237 = arith.addf %234, %236 : vector<8x16xf32>
    %c3_177 = arith.constant 3 : index
    %c0_178 = arith.constant 0 : index
    %c0_179 = arith.constant 0 : index
    %238 = vector.load %arg16[%c3_177, %c0_178, %c0_179] : memref<4x8x16xf32, #tpu.memory_space<vmem>>, vector<1x8x16xf32>
    %239 = vector.shape_cast %238 : vector<1x8x16xf32> to vector<8x16xf32>
    %240 = vector.shape_cast %237 : vector<8x16xf32> to vector<1x8x16xf32>
    tpu.vector_store %arg16[%c3_177, %c0_178, %c0_179], %240 {strides = array<i32>} : memref<4x8x16xf32, #tpu.memory_space<vmem>>, vector<1x8x16xf32>,
    %c3_180 = arith.constant 3 : index
    %c0_181 = arith.constant 0 : index
    %c0_182 = arith.constant 0 : index
    %241 = vector.load %arg17[%c3_180, %c0_181, %c0_182] : memref<4x1x16xf32, #tpu.memory_space<vmem>>, vector<1x1x16xf32>
    %242 = vector.shape_cast %241 : vector<1x1x16xf32> to vector<1x16xf32>
    %243 = vector.shape_cast %216 : vector<1x16xf32> to vector<1x1x16xf32>
    tpu.vector_store %arg17[%c3_180, %c0_181, %c0_182], %243 {strides = array<i32>} : memref<4x1x16xf32, #tpu.memory_space<vmem>>, vector<1x1x16xf32>,
    %c0_183 = arith.constant 0 : index
    %c0_184 = arith.constant 0 : index
    %c0_185 = arith.constant 0 : index
    %244 = vector.load %arg16[%c0_183, %c0_184, %c0_185] : memref<4x8x16xf32, #tpu.memory_space<vmem>>, vector<4x8x16xf32>
    %c0_186 = arith.constant 0 : index
    %c0_187 = arith.constant 0 : index
    %c0_188 = arith.constant 0 : index
    %245 = vector.load %arg18[%c0_186, %c0_187, %c0_188] : memref<4x1x16xf32, #tpu.memory_space<vmem>>, vector<4x1x16xf32>
    %246 = tpu.reciprocal %245 {approx = true} : vector<4x1x16xf32> -> vector<4x1x16xf32>
    %247 = vector.broadcast %246 : vector<4x1x16xf32> to vector<4x8x16xf32>
    %248 = arith.mulf %244, %247 : vector<4x8x16xf32>
    %c0_189 = arith.constant 0 : index
    %c0_190 = arith.constant 0 : index
    %249 = vector.load %arg7[%c0_189, %c0_190] : memref<32x32xbf16, #tpu.memory_space<vmem>>, vector<32x32xbf16>
    %250 = vector.shape_cast %248 : vector<4x8x16xf32> to vector<32x16xf32>
    %251 = arith.truncf %250 : vector<32x16xf32> to vector<32x16xbf16>
    %cst_191 = arith.constant dense<0.000000e+00> : vector<32x16xf32>
    %252 = tpu.matmul %249, %251, %cst_191 {dimension_numbers = #tpu.dot_dimension_numbers<[1], [0], [0], [1], [0, 0, 1, 1], [], []>} : vector<32x32xbf16>, vector<32x16xbf16>, vector<32x16xf32> -> vector<32x16xf32>
    %c0_192 = arith.constant 0 : index
    %c0_193 = arith.constant 0 : index
    %253 = vector.load %arg11[%c0_192, %c0_193] : memref<32x1xf32, #tpu.memory_space<vmem>>, vector<32x1xf32>
    %254 = vector.broadcast %253 : vector<32x1xf32> to vector<32x16xf32>
    %255 = arith.addf %252, %254 : vector<32x16xf32>
    %c0_194 = arith.constant 0 : index
    %c0_195 = arith.constant 0 : index
    %c0_196 = arith.constant 0 : index
    %256 = vector.load %arg13[%c0_194, %c0_195, %c0_196] : memref<1x32x16xf32, #tpu.memory_space<vmem>>, vector<1x32x16xf32>
    %257 = vector.shape_cast %256 : vector<1x32x16xf32> to vector<32x16xf32>
    %258 = vector.shape_cast %255 : vector<32x16xf32> to vector<1x32x16xf32>
    tpu.vector_store %arg13[%c0_194, %c0_195, %c0_196], %258 {strides = array<i32>} : memref<1x32x16xf32, #tpu.memory_space<vmem>>, vector<1x32x16xf32>,
    return
  }
  func.func @transform_0(%arg0: i32, %arg1: i32) -> (i32, i32, i32) {
    %c0_i32 = arith.constant 0 : i32
    %c0_i32_0 = arith.constant 0 : i32
    return %arg0, %c0_i32, %arg1 : i32, i32, i32
  }
  func.func @transform_1(%arg0: i32, %arg1: i32) -> (i32, i32, i32) {
    %c0_i32 = arith.constant 0 : i32
    %c0_i32_0 = arith.constant 0 : i32
    %c0_i32_1 = arith.constant 0 : i32
    return %arg0, %c0_i32, %c0_i32_0 : i32, i32, i32
  }
  func.func @transform_2(%arg0: i32, %arg1: i32) -> (i32, i32) {
    %c0_i32 = arith.constant 0 : i32
    %c0_i32_0 = arith.constant 0 : i32
    %c0_i32_1 = arith.constant 0 : i32
    return %c0_i32, %c0_i32_0 : i32, i32
  }
  func.func @transform_3(%arg0: i32, %arg1: i32) -> (i32, i32) {
    %c0_i32 = arith.constant 0 : i32
    %c0_i32_0 = arith.constant 0 : i32
    %c0_i32_1 = arith.constant 0 : i32
    return %c0_i32, %c0_i32_0 : i32, i32
  }
  func.func @transform_4(%arg0: i32, %arg1: i32) -> (i32, i32) {
    %c0_i32 = arith.constant 0 : i32
    %c0_i32_0 = arith.constant 0 : i32
    %c0_i32_1 = arith.constant 0 : i32
    return %c0_i32, %c0_i32_0 : i32, i32
  }
  func.func @transform_5(%arg0: i32, %arg1: i32) -> (i32, i32) {
    %c0_i32 = arith.constant 0 : i32
    %c0_i32_0 = arith.constant 0 : i32
    %c0_i32_1 = arith.constant 0 : i32
    return %c0_i32, %c0_i32_0 : i32, i32
  }
  func.func @transform_6(%arg0: i32, %arg1: i32) -> (i32, i32) {
    %c0_i32 = arith.constant 0 : i32
    %c0_i32_0 = arith.constant 0 : i32
    %c0_i32_1 = arith.constant 0 : i32
    return %c0_i32, %c0_i32_0 : i32, i32
  }
  func.func @transform_7(%arg0: i32, %arg1: i32) -> (i32, i32) {
    %c0_i32 = arith.constant 0 : i32
    %c0_i32_0 = arith.constant 0 : i32
    %c0_i32_1 = arith.constant 0 : i32
    return %c0_i32, %c0_i32_0 : i32, i32
  }
  func.func @transform_8(%arg0: i32, %arg1: i32) -> (i32, i32) {
    %c0_i32 = arith.constant 0 : i32
    %c0_i32_0 = arith.constant 0 : i32
    %c0_i32_1 = arith.constant 0 : i32
    return %c0_i32, %c0_i32_0 : i32, i32
  }
  func.func @transform_9(%arg0: i32, %arg1: i32) -> (i32, i32) {
    %c0_i32 = arith.constant 0 : i32
    %c0_i32_0 = arith.constant 0 : i32
    %c0_i32_1 = arith.constant 0 : i32
    return %c0_i32, %c0_i32_0 : i32, i32
  }
  func.func @transform_10(%arg0: i32, %arg1: i32) -> (i32, i32, i32) {
    %c0_i32 = arith.constant 0 : i32
    %c0_i32_0 = arith.constant 0 : i32
    return %arg0, %c0_i32, %arg1 : i32, i32, i32
  }
  func.func @transform_11(%arg0: i32, %arg1: i32) -> (i32, i32, i32) {
    %c0_i32 = arith.constant 0 : i32
    %c0_i32_0 = arith.constant 0 : i32
    return %arg0, %c0_i32, %arg1 : i32, i32, i32
  }
}

</mosaic_0001>

<llo_original>
// kernel: tpu_custom_call.1
$region0: #{tpu_custom_call.1}
  #allocation0 [shape = 'u32[]', space=smem, size = 0x4, offset = 0x4, fixed_abs, tag = 'smem constant byte address 0x4 - core index']
  #allocation1 [shape = 'u32[144,128]{1,0:T(1,128)}', space=vmem, size = 0x12000, scoped, tag = 'internal scratch']
  #allocation2 [shape = 'bf16[4,8,24]{2,1,0:T(8,128)(2,1)}', space=vmem, size = 0x2000, scoped, tag = 'scratch operand']
  #allocation3 [shape = 'bf16[4,8,24]{2,1,0:T(8,128)(2,1)}', space=vmem, size = 0x2000, scoped, tag = 'scratch operand']
  #allocation4 [shape = 'f32[4,8,16]{2,1,0:T(8,128)}', space=vmem, size = 0x4000, scoped, tag = 'scratch operand']
  #allocation5 [shape = 'f32[4,1,16]{2,1,0:T(1,128)}', space=vmem, size = 0x800, scoped, tag = 'scratch operand']
  #allocation6 [shape = 'f32[4,1,16]{2,1,0:T(1,128)}', space=vmem, size = 0x800, scoped, tag = 'scratch operand']
  %s0 = inlined_call_operand.vmem [shape: f32[2,32,16], index: 0, kind: input, shape index: {}]
  %s1 = inlined_call_operand.vmem [shape: f32[2,32,24], index: 1, kind: input, shape index: {}]
  %s2 = inlined_call_operand.vmem [shape: bf16[32,32], index: 2, kind: input, shape index: {}]
  %s3 = inlined_call_operand.vmem [shape: bf16[32,32], index: 3, kind: input, shape index: {}]
  %s4 = inlined_call_operand.vmem [shape: bf16[32,32], index: 4, kind: input, shape index: {}]
  %s5 = inlined_call_operand.vmem [shape: bf16[32,32], index: 5, kind: input, shape index: {}]
  %s6 = inlined_call_operand.vmem [shape: f32[32,1], index: 6, kind: input, shape index: {}]
  %s7 = inlined_call_operand.vmem [shape: f32[32,1], index: 7, kind: input, shape index: {}]
  %s8 = inlined_call_operand.vmem [shape: f32[32,1], index: 8, kind: input, shape index: {}]
  %s9 = inlined_call_operand.vmem [shape: f32[32,1], index: 9, kind: input, shape index: {}]
  %s10 = inlined_call_operand.vmem [shape: s8[2,24,16], index: 10, kind: input, shape index: {}]
  %s11 = inlined_call_operand.vmem [shape: f32[2,32,16], index: 11, kind: output, shape index: {}]
  %s12 = sld [smem:[#allocation0]]
  $region81: #{tpu_custom_call.1} parent=0
    _
  %s14 = ssub.s32 1, %s12
  %s15 = scalar_select 0, %s14, %s12
  loop: start=0, step=1, limit=4
  $region2: #{tpu_custom_call.1} parent=0 // loop_pre_header
    _
  $region3: #{tpu_custom_call.1} parent=0 // loop_header
    %s17 = sphi 0, %s21
    %p18 = scmp.ge.s32.totalorder %s17, 4
    %s24 = sphi 0, %s36
    %s25 = sphi 0, %s32
    %s26 = sphi 0, %s24
    %s27 = sphi 0, %s25
    %s28 = sphi 0, %s26
    %s29 = sphi 0, %s27
    %s41 = sphi 0, %s43
    %s44 = sphi 0, %s41
    %s45 = sphi 0, %s44
    %s61 = sphi 0, %s45
    %s67 = sphi 0, %s69
    %s70 = sphi 0, %s67
    %s71 = sphi 0, %s70
    %s87 = sphi 0, %s71
    %s91 = sphi 0, %s91
    %s93 = sphi 0, %s91
    %s94 = sphi 0, %s93
    %s108 = sphi 0, %s94
    %s112 = sphi 0, %s112
    %s114 = sphi 0, %s112
    %s115 = sphi 0, %s114
    %s129 = sphi 0, %s115
    %s133 = sphi 0, %s133
    %s135 = sphi 0, %s133
    %s136 = sphi 0, %s135
    %s150 = sphi 0, %s136
    %s154 = sphi 0, %s154
    %s156 = sphi 0, %s154
    %s157 = sphi 0, %s156
    %s171 = sphi 0, %s157
    %s175 = sphi 0, %s175
    %s177 = sphi 0, %s175
    %s178 = sphi 0, %s177
    %s192 = sphi 0, %s178
    %s196 = sphi 0, %s196
    %s198 = sphi 0, %s196
    %s199 = sphi 0, %s198
    %s213 = sphi 0, %s199
    %s217 = sphi 0, %s217
    %s219 = sphi 0, %s217
    %s220 = sphi 0, %s219
    %s234 = sphi 0, %s220
    %s238 = sphi 0, %s238
    %s240 = sphi 0, %s238
    %s241 = sphi 0, %s240
    %s255 = sphi 0, %s241
    %s263 = sphi 0, %s265
    %s266 = sphi 0, %s263
    %s267 = sphi 0, %s266
    %s283 = sphi 0, %s267
    %s291 = sphi 0, %s293
    %s294 = sphi 0, %s291
    %s295 = sphi 0, %s294
    %s311 = sphi 0, %s295
  $region4: #{tpu_custom_call.1} parent=0 // loop_header_branch
    %20 = sbr.rel (%p18) target = $region8
  $region5: #{tpu_custom_call.1} parent=0 // loop_body
    %s22 = ssub.s32 %s17, 1
    %s23 = ssub.s32 %s17, 2
    %s30 = sadd.s32 1, %s25
    %p31 = scmp.ge.s32.totalorder %s30, 1
    %s32 = scalar_select %p31, 0, %s30
    %s33 = sadd.s32 1, %s24
    %s34 = scalar_select %p31, %s33, %s24
    %p35 = scmp.ge.s32.totalorder %s34, 2
    %s36 = scalar_select %p35, 0, %s34
    %s37 = ssub.s32 %s24, %s36
    %s38 = ssub.s32 %s25, %s32
    %s39 = sor.u32 %s37, %s38
    %p40 = scmp.eq.s32.totalorder %s39, 0
    %s42 = sadd.s32 %s41, 1
    %s43 = scalar_select %p40, %s41, %s42
    %p46 = pneg %p40
    %p47 = scmp.eq.s32.totalorder %s17, 1
    %p48 = por %p46, %p47
    %p49 = scmp.ne.s32.totalorder %s41, %s44
    %p50 = scmp.eq.s32.totalorder %s17, 0
    %p51 = por %p49, %p50
    %p52 = scmp.ne.s32.totalorder %s41, %s44
    %p53 = scmp.eq.s32.totalorder %s22, 1
    %p54 = por %p52, %p53
    %p55 = scmp.ne.s32.totalorder %s44, %s45
    %p56 = scmp.eq.s32.totalorder %s22, 0
    %p57 = por %p55, %p56
    %p58 = scmp.ne.s32.totalorder %s44, %s45
    %p59 = scmp.eq.s32.totalorder %s23, 1
    %p60 = por %p58, %p59
    %p62 = scmp.ne.s32.totalorder %s45, %s61
    %p63 = scmp.eq.s32.totalorder %s23, 0
    %p64 = por %p62, %p63
    %s65 = ssub.s32 %s24, %s36
    %p66 = scmp.eq.s32.totalorder %s65, 0
    %s68 = sadd.s32 %s67, 1
    %s69 = scalar_select %p66, %s67, %s68
    %p72 = pneg %p66
    %p73 = scmp.eq.s32.totalorder %s17, 1
    %p74 = por %p72, %p73
    %p75 = scmp.ne.s32.totalorder %s67, %s70
    %p76 = scmp.eq.s32.totalorder %s17, 0
    %p77 = por %p75, %p76
    %p78 = scmp.ne.s32.totalorder %s67, %s70
    %p79 = scmp.eq.s32.totalorder %s22, 1
    %p80 = por %p78, %p79
    %p81 = scmp.ne.s32.totalorder %s70, %s71
    %p82 = scmp.eq.s32.totalorder %s22, 0
    %p83 = por %p81, %p82
    %p84 = scmp.ne.s32.totalorder %s70, %s71
    %p85 = scmp.eq.s32.totalorder %s23, 1
    %p86 = por %p84, %p85
    %p88 = scmp.ne.s32.totalorder %s71, %s87
    %p89 = scmp.eq.s32.totalorder %s23, 0
    %p90 = por %p88, %p89
    %s92 = sadd.s32 %s91, 1
    %p95 = scmp.eq.s32.totalorder %s17, 1
    %p96 = scmp.ne.s32.totalorder %s91, %s93
    %p97 = scmp.eq.s32.totalorder %s17, 0
    %p98 = por %p96, %p97
    %p99 = scmp.ne.s32.totalorder %s91, %s93
    %p100 = scmp.eq.s32.totalorder %s22, 1
    %p101 = por %p99, %p100
    %p102 = scmp.ne.s32.totalorder %s93, %s94
    %p103 = scmp.eq.s32.totalorder %s22, 0
    %p104 = por %p102, %p103
    %p105 = scmp.ne.s32.totalorder %s93, %s94
    %p106 = scmp.eq.s32.totalorder %s23, 1
    %p107 = por %p105, %p106
    %p109 = scmp.ne.s32.totalorder %s94, %s108
    %p110 = scmp.eq.s32.totalorder %s23, 0
    %p111 = por %p109, %p110
    %s113 = sadd.s32 %s112, 1
    %p116 = scmp.eq.s32.totalorder %s17, 1
    %p117 = scmp.ne.s32.totalorder %s112, %s114
    %p118 = scmp.eq.s32.totalorder %s17, 0
    %p119 = por %p117, %p118
    %p120 = scmp.ne.s32.totalorder %s112, %s114
    %p121 = scmp.eq.s32.totalorder %s22, 1
    %p122 = por %p120, %p121
    %p123 = scmp.ne.s32.totalorder %s114, %s115
    %p124 = scmp.eq.s32.totalorder %s22, 0
    %p125 = por %p123, %p124
    %p126 = scmp.ne.s32.totalorder %s114, %s115
    %p127 = scmp.eq.s32.totalorder %s23, 1
    %p128 = por %p126, %p127
    %p130 = scmp.ne.s32.totalorder %s115, %s129
    %p131 = scmp.eq.s32.totalorder %s23, 0
    %p132 = por %p130, %p131
    %s134 = sadd.s32 %s133, 1
    %p137 = scmp.eq.s32.totalorder %s17, 1
    %p138 = scmp.ne.s32.totalorder %s133, %s135
    %p139 = scmp.eq.s32.totalorder %s17, 0
    %p140 = por %p138, %p139
    %p141 = scmp.ne.s32.totalorder %s133, %s135
    %p142 = scmp.eq.s32.totalorder %s22, 1
    %p143 = por %p141, %p142
    %p144 = scmp.ne.s32.totalorder %s135, %s136
    %p145 = scmp.eq.s32.totalorder %s22, 0
    %p146 = por %p144, %p145
    %p147 = scmp.ne.s32.totalorder %s135, %s136
    %p148 = scmp.eq.s32.totalorder %s23, 1
    %p149 = por %p147, %p148
    %p151 = scmp.ne.s32.totalorder %s136, %s150
    %p152 = scmp.eq.s32.totalorder %s23, 0
    %p153 = por %p151, %p152
    %s155 = sadd.s32 %s154, 1
    %p158 = scmp.eq.s32.totalorder %s17, 1
    %p159 = scmp.ne.s32.totalorder %s154, %s156
    %p160 = scmp.eq.s32.totalorder %s17, 0
    %p161 = por %p159, %p160
    %p162 = scmp.ne.s32.totalorder %s154, %s156
    %p163 = scmp.eq.s32.totalorder %s22, 1
    %p164 = por %p162, %p163
    %p165 = scmp.ne.s32.totalorder %s156, %s157
    %p166 = scmp.eq.s32.totalorder %s22, 0
    %p167 = por %p165, %p166
    %p168 = scmp.ne.s32.totalorder %s156, %s157
    %p169 = scmp.eq.s32.totalorder %s23, 1
    %p170 = por %p168, %p169
    %p172 = scmp.ne.s32.totalorder %s157, %s171
    %p173 = scmp.eq.s32.totalorder %s23, 0
    %p174 = por %p172, %p173
    %s176 = sadd.s32 %s175, 1
    %p179 = scmp.eq.s32.totalorder %s17, 1
    %p180 = scmp.ne.s32.totalorder %s175, %s177
    %p181 = scmp.eq.s32.totalorder %s17, 0
    %p182 = por %p180, %p181
    %p183 = scmp.ne.s32.totalorder %s175, %s177
    %p184 = scmp.eq.s32.totalorder %s22, 1
    %p185 = por %p183, %p184
    %p186 = scmp.ne.s32.totalorder %s177, %s178
    %p187 = scmp.eq.s32.totalorder %s22, 0
    %p188 = por %p186, %p187
    %p189 = scmp.ne.s32.totalorder %s177, %s178
    %p190 = scmp.eq.s32.totalorder %s23, 1
    %p191 = por %p189, %p190
    %p193 = scmp.ne.s32.totalorder %s178, %s192
    %p194 = scmp.eq.s32.totalorder %s23, 0
    %p195 = por %p193, %p194
    %s197 = sadd.s32 %s196, 1
    %p200 = scmp.eq.s32.totalorder %s17, 1
    %p201 = scmp.ne.s32.totalorder %s196, %s198
    %p202 = scmp.eq.s32.totalorder %s17, 0
    %p203 = por %p201, %p202
    %p204 = scmp.ne.s32.totalorder %s196, %s198
    %p205 = scmp.eq.s32.totalorder %s22, 1
    %p206 = por %p204, %p205
    %p207 = scmp.ne.s32.totalorder %s198, %s199
    %p208 = scmp.eq.s32.totalorder %s22, 0
    %p209 = por %p207, %p208
    %p210 = scmp.ne.s32.totalorder %s198, %s199
    %p211 = scmp.eq.s32.totalorder %s23, 1
    %p212 = por %p210, %p211
    %p214 = scmp.ne.s32.totalorder %s199, %s213
    %p215 = scmp.eq.s32.totalorder %s23, 0
    %p216 = por %p214, %p215
    %s218 = sadd.s32 %s217, 1
    %p221 = scmp.eq.s32.totalorder %s17, 1
    %p222 = scmp.ne.s32.totalorder %s217, %s219
    %p223 = scmp.eq.s32.totalorder %s17, 0
    %p224 = por %p222, %p223
    %p225 = scmp.ne.s32.totalorder %s217, %s219
    %p226 = scmp.eq.s32.totalorder %s22, 1
    %p227 = por %p225, %p226
    %p228 = scmp.ne.s32.totalorder %s219, %s220
    %p229 = scmp.eq.s32.totalorder %s22, 0
    %p230 = por %p228, %p229
    %p231 = scmp.ne.s32.totalorder %s219, %s220
    %p232 = scmp.eq.s32.totalorder %s23, 1
    %p233 = por %p231, %p232
    %p235 = scmp.ne.s32.totalorder %s220, %s234
    %p236 = scmp.eq.s32.totalorder %s23, 0
    %p237 = por %p235, %p236
    %s239 = sadd.s32 %s238, 1
    %p242 = scmp.eq.s32.totalorder %s17, 1
    %p243 = scmp.ne.s32.totalorder %s238, %s240
    %p244 = scmp.eq.s32.totalorder %s17, 0
    %p245 = por %p243, %p244
    %p246 = scmp.ne.s32.totalorder %s238, %s240
    %p247 = scmp.eq.s32.totalorder %s22, 1
    %p248 = por %p246, %p247
    %p249 = scmp.ne.s32.totalorder %s240, %s241
    %p250 = scmp.eq.s32.totalorder %s22, 0
    %p251 = por %p249, %p250
    %p252 = scmp.ne.s32.totalorder %s240, %s241
    %p253 = scmp.eq.s32.totalorder %s23, 1
    %p254 = por %p252, %p253
    %p256 = scmp.ne.s32.totalorder %s241, %s255
    %p257 = scmp.eq.s32.totalorder %s23, 0
    %p258 = por %p256, %p257
    %s259 = ssub.s32 %s24, %s36
    %s260 = ssub.s32 %s25, %s32
    %s261 = sor.u32 %s259, %s260
    %p262 = scmp.eq.s32.totalorder %s261, 0
    %s264 = sadd.s32 %s263, 1
    %s265 = scalar_select %p262, %s263, %s264
    %p268 = pneg %p262
    %p269 = scmp.eq.s32.totalorder %s17, 1
    %p270 = por %p268, %p269
    %p271 = scmp.ne.s32.totalorder %s263, %s266
    %p272 = scmp.eq.s32.totalorder %s17, 0
    %p273 = por %p271, %p272
    %p274 = scmp.ne.s32.totalorder %s263, %s266
    %p275 = scmp.eq.s32.totalorder %s22, 1
    %p276 = por %p274, %p275
    %p277 = scmp.ne.s32.totalorder %s266, %s267
    %p278 = scmp.eq.s32.totalorder %s22, 0
    %p279 = por %p277, %p278
    %p280 = scmp.ne.s32.totalorder %s266, %s267
    %p281 = scmp.eq.s32.totalorder %s23, 1
    %p282 = por %p280, %p281
    %p284 = scmp.ne.s32.totalorder %s267, %s283
    %p285 = scmp.eq.s32.totalorder %s23, 0
    %p286 = por %p284, %p285
    %s287 = ssub.s32 %s24, %s36
    %s288 = ssub.s32 %s25, %s32
    %s289 = sor.u32 %s287, %s288
    %p290 = scmp.eq.s32.totalorder %s289, 0
    %s292 = sadd.s32 %s291, 1
    %s293 = scalar_select %p290, %s291, %s292
    %p296 = pneg %p290
    %p297 = scmp.eq.s32.totalorder %s17, 1
    %p298 = por %p296, %p297
    %p299 = scmp.ne.s32.totalorder %s291, %s294
    %p300 = scmp.eq.s32.totalorder %s17, 0
    %p301 = por %p299, %p300
    %p302 = scmp.ne.s32.totalorder %s291, %s294
    %p303 = scmp.eq.s32.totalorder %s22, 1
    %p304 = por %p302, %p303
    %p305 = scmp.ne.s32.totalorder %s294, %s295
    %p306 = scmp.eq.s32.totalorder %s22, 0
    %p307 = por %p305, %p306
    %p308 = scmp.ne.s32.totalorder %s294, %s295
    %p309 = scmp.eq.s32.totalorder %s23, 1
    %p310 = por %p308, %p309
    %p312 = scmp.ne.s32.totalorder %s295, %s311
    %p313 = scmp.eq.s32.totalorder %s23, 0
    %p314 = por %p312, %p313
    %p315 = scmp.le.s32.totalorder 1, %s17
    %p316 = scmp.lt.s32.totalorder %s17, 3
    %p317 = pnand %p315, %p316
    %p318 = pneg %p317
    // Predicated region
    $region9: #{tpu_custom_call.1} parent=5 // pred_check
      _
    $region10: #{tpu_custom_call.1} parent=5 // pred_check_branch
      %320 = sbr.rel (%p317) target = $region12
    $region11: #{tpu_custom_call.1} parent=5 // pred_region
      %s321 = ssub.s32 %s17, 1
      // Predicated region
      $region13: #{tpu_custom_call.1} parent=11 // pred_check
        %p322 = pneg %p104
      $region14: #{tpu_custom_call.1} parent=11 // pred_check_branch
        %324 = sbr.rel (%p322) target = $region16
      $region15: #{tpu_custom_call.1} parent=11 // pred_region
        _
      $region16: #{tpu_custom_call.1} parent=11 // pred_fallthru
        _
      // Predicated region
      $region17: #{tpu_custom_call.1} parent=11 // pred_check
        %p325 = pneg %p125
      $region18: #{tpu_custom_call.1} parent=11 // pred_check_branch
        %327 = sbr.rel (%p325) target = $region20
      $region19: #{tpu_custom_call.1} parent=11 // pred_region
        _
      $region20: #{tpu_custom_call.1} parent=11 // pred_fallthru
        _
      // Predicated region
      $region21: #{tpu_custom_call.1} parent=11 // pred_check
        %p328 = pneg %p146
      $region22: #{tpu_custom_call.1} parent=11 // pred_check_branch
        %330 = sbr.rel (%p328) target = $region24
      $region23: #{tpu_custom_call.1} parent=11 // pred_region
        _
      $region24: #{tpu_custom_call.1} parent=11 // pred_fallthru
        _
      // Predicated region
      $region25: #{tpu_custom_call.1} parent=11 // pred_check
        %p331 = pneg %p167
      $region26: #{tpu_custom_call.1} parent=11 // pred_check_branch
        %333 = sbr.rel (%p331) target = $region28
      $region27: #{tpu_custom_call.1} parent=11 // pred_region
        _
      $region28: #{tpu_custom_call.1} parent=11 // pred_fallthru
        _
      // Predicated region
      $region29: #{tpu_custom_call.1} parent=11 // pred_check
        %p334 = pneg %p188
      $region30: #{tpu_custom_call.1} parent=11 // pred_check_branch
        %336 = sbr.rel (%p334) target = $region32
      $region31: #{tpu_custom_call.1} parent=11 // pred_region
        _
      $region32: #{tpu_custom_call.1} parent=11 // pred_fallthru
        _
      // Predicated region
      $region33: #{tpu_custom_call.1} parent=11 // pred_check
        %p337 = pneg %p209
      $region34: #{tpu_custom_call.1} parent=11 // pred_check_branch
        %339 = sbr.rel (%p337) target = $region36
      $region35: #{tpu_custom_call.1} parent=11 // pred_region
        _
      $region36: #{tpu_custom_call.1} parent=11 // pred_fallthru
        _
      // Predicated region
      $region37: #{tpu_custom_call.1} parent=11 // pred_check
        %p340 = pneg %p230
      $region38: #{tpu_custom_call.1} parent=11 // pred_check_branch
        %342 = sbr.rel (%p340) target = $region40
      $region39: #{tpu_custom_call.1} parent=11 // pred_region
        _
      $region40: #{tpu_custom_call.1} parent=11 // pred_fallthru
        _
      // Predicated region
      $region41: #{tpu_custom_call.1} parent=11 // pred_check
        %p343 = pneg %p251
      $region42: #{tpu_custom_call.1} parent=11 // pred_check_branch
        %345 = sbr.rel (%p343) target = $region44
      $region43: #{tpu_custom_call.1} parent=11 // pred_region
        _
      $region44: #{tpu_custom_call.1} parent=11 // pred_fallthru
        _
    $region12: #{tpu_custom_call.1} parent=5 // pred_fallthru
      _
    %p346 = scmp.lt.s32.totalorder %s17, 2
    // Predicated region
    $region45: #{tpu_custom_call.1} parent=5 // pred_check
      %p347 = pneg %p346
    $region46: #{tpu_custom_call.1} parent=5 // pred_check_branch
      %349 = sbr.rel (%p347) target = $region48
    $region47: #{tpu_custom_call.1} parent=5 // pred_region
      // Predicated region
      $region49: #{tpu_custom_call.1} parent=47 // pred_check
        %p350 = pneg %p51
      $region50: #{tpu_custom_call.1} parent=47 // pred_check_branch
        %352 = sbr.rel (%p350) target = $region52
      $region51: #{tpu_custom_call.1} parent=47 // pred_region
        %p353 = scmp.lt.s32.totalorder %s24, 1
        %s354 = scalar_select %p353, %s24, 1
        %p355 = scmp.lt.s32.totalorder %s25, 0
        %s356 = scalar_select %p355, %s25, 0
        %s357 = smul.addr %s354, 4
        %s358 = sadd.s32 %s356, %s357
        %s359 = smul.addr %s358, 8
        %s360 = scalar_lea.vmem %s0, %s359
      $region52: #{tpu_custom_call.1} parent=47 // pred_fallthru
        _
      // Predicated region
      $region53: #{tpu_custom_call.1} parent=47 // pred_check
        %p361 = pneg %p77
      $region54: #{tpu_custom_call.1} parent=47 // pred_check_branch
        %363 = sbr.rel (%p361) target = $region56
      $region55: #{tpu_custom_call.1} parent=47 // pred_region
        %p364 = scmp.lt.s32.totalorder %s24, 1
        %s365 = scalar_select %p364, %s24, 1
        %s366 = smul.addr %s365, 4
        %s367 = smul.addr %s366, 8
        %s368 = scalar_lea.vmem %s1, %s367
      $region56: #{tpu_custom_call.1} parent=47 // pred_fallthru
        _
      // Predicated region
      $region57: #{tpu_custom_call.1} parent=47 // pred_check
        %p369 = pneg %p273
      $region58: #{tpu_custom_call.1} parent=47 // pred_check_branch
        %371 = sbr.rel (%p369) target = $region60
      $region59: #{tpu_custom_call.1} parent=47 // pred_region
        %p372 = scmp.lt.s32.totalorder %s24, 1
        %s373 = scalar_select %p372, %s24, 1
        %p374 = scmp.lt.s32.totalorder %s25, 0
        %s375 = scalar_select %p374, %s25, 0
        %s376 = smul.addr %s373, 3
        %s377 = sadd.s32 %s375, %s376
        %s378 = smul.addr %s377, 2
        %s379 = scalar_lea.vmem %s10, %s378
      $region60: #{tpu_custom_call.1} parent=47 // pred_fallthru
        _
    $region48: #{tpu_custom_call.1} parent=5 // pred_fallthru
      _
    %p380 = scmp.le.s32.totalorder 1, %s17
    %p381 = scmp.lt.s32.totalorder %s17, 3
    %p382 = pnand %p380, %p381
    %p383 = pneg %p382
    // Predicated region
    $region61: #{tpu_custom_call.1} parent=5 // pred_check
      _
    $region62: #{tpu_custom_call.1} parent=5 // pred_check_branch
      %385 = sbr.rel (%p382) target = $region64
    $region63: #{tpu_custom_call.1} parent=5 // pred_region
      %s386 = ssub.s32 %s17, 1
      %p387 = scmp.lt.s32.totalorder %s26, 1
      %s388 = scalar_select %p387, %s26, 1
      %p389 = scmp.lt.s32.totalorder %s27, 0
      %s390 = scalar_select %p389, %s27, 0
      %s391 = smul.addr %s388, 4
      %s392 = sadd.s32 %s390, %s391
      %s393 = smul.addr %s392, 8
      %s394 = scalar_lea.vmem %s0, %s393
      %p395 = pneg %p57
      %p396 = pneg %p54
      %p397 = scmp.lt.s32.totalorder %s26, 1
      %s398 = scalar_select %p397, %s26, 1
      %s399 = smul.addr %s398, 4
      %s400 = smul.addr %s399, 8
      %s401 = scalar_lea.vmem %s1, %s400
      %p402 = pneg %p83
      %p403 = pneg %p80
      %p404 = pneg %p104
      %p405 = pneg %p101
      %p406 = pneg %p125
      %p407 = pneg %p122
      %p408 = pneg %p146
      %p409 = pneg %p143
      %p410 = pneg %p167
      %p411 = pneg %p164
      %p412 = pneg %p188
      %p413 = pneg %p185
      %p414 = pneg %p209
      %p415 = pneg %p206
      %p416 = pneg %p230
      %p417 = pneg %p227
      %p418 = pneg %p251
      %p419 = pneg %p248
      %p420 = scmp.lt.s32.totalorder %s26, 1
      %s421 = scalar_select %p420, %s26, 1
      %p422 = scmp.lt.s32.totalorder %s27, 0
      %s423 = scalar_select %p422, %s27, 0
      %s424 = smul.addr %s421, 3
      %s425 = sadd.s32 %s423, %s424
      %s426 = smul.addr %s425, 2
      %s427 = scalar_lea.vmem %s10, %s426
      %p428 = pneg %p279
      %p429 = pneg %p276
      %p430 = pneg %p307
      %p431 = pneg %p304
      %p432 = scmp.lt.s32.totalorder %s26, 1
      %s433 = scalar_select %p432, %s26, 1
      %p434 = scmp.lt.s32.totalorder %s27, 0
      %s435 = scalar_select %p434, %s27, 0
      %s436 = smul.addr %s433, 4
      %s437 = sadd.s32 %s435, %s436
      %s438 = smul.addr %s437, 8
      %s439 = scalar_lea.vmem %s11, %s438
      %p440 = scmp.lt.s32.totalorder %s26, 1
      %s441 = scalar_select %p440, %s26, 1
      %p442 = scmp.lt.s32.totalorder %s27, 0
      %s443 = scalar_select %p442, %s27, 0
      %s444 = smul.addr %s441, 4
      %s445 = sadd.s32 %s443, %s444
      %s446 = smul.addr %s445, 8
      %s447 = scalar_lea.vmem %s0, %s446
      %p448 = scmp.lt.s32.totalorder %s26, 1
      %s449 = scalar_select %p448, %s26, 1
      %s450 = smul.addr %s449, 4
      %s451 = smul.addr %s450, 8
      %s452 = scalar_lea.vmem %s1, %s451
      %p453 = scmp.lt.s32.totalorder %s26, 1
      %s454 = scalar_select %p453, %s26, 1
      %p455 = scmp.lt.s32.totalorder %s27, 0
      %s456 = scalar_select %p455, %s27, 0
      %s457 = smul.addr %s454, 3
      %s458 = sadd.s32 %s456, %s457
      %s459 = smul.addr %s458, 2
      %s460 = scalar_lea.vmem %s10, %s459
      %p461 = scmp.lt.s32.totalorder %s26, 1
      %s462 = scalar_select %p461, %s26, 1
      %p463 = scmp.lt.s32.totalorder %s27, 0
      %s464 = scalar_select %p463, %s27, 0
      %s465 = smul.addr %s462, 4
      %s466 = sadd.s32 %s464, %s465
      %s467 = smul.addr %s466, 8
      %s468 = scalar_lea.vmem %s11, %s467
      %p472 = scmp.eq.s32.totalorder %s27, 0
      // Predicated region
      $region65: #{tpu_custom_call.1} parent=63 // pred_check
        %p473 = pneg %p472
      $region66: #{tpu_custom_call.1} parent=63 // pred_check_branch
        %475 = sbr.rel (%p473) target = $region68
      $region67: #{tpu_custom_call.1} parent=63 // pred_region
        %v476 = vld [vmem:[%s452] sm:$0xff]
        %v477 = vld [vmem:[%s452 + $0x8] sm:$0xff]
        %v478 = vld [vmem:[%s452 + $0x10] sm:$0xff]
        %v479 = vld [vmem:[%s452 + $0x18] sm:$0xff]
        %v480 = vpack.c.bf16 %v477, %v476
        %v481 = vpack.c.bf16 %v479, %v478
        %v482 = vld [vmem:[%s3] sm:$0xf]
        %v483 = vld [vmem:[%s3 + $0x4] sm:$0xf]
        %v484 = vld [vmem:[%s3 + $0x8] sm:$0xf]
        %v485 = vld [vmem:[%s3 + $0xc] sm:$0xf]
        %v486 = vld [vmem:[%s7] sm:$0xff]
        %v487 = vld [vmem:[%s7 + $0x8] sm:$0xff]
        %v488 = vld [vmem:[%s7 + $0x10] sm:$0xff]
        %v489 = vld [vmem:[%s7 + $0x18] sm:$0xff]
        %491 = vset.pattern.permute.xlu0 0
        %492 = vperm.xlu0 %491, %v486
        %v493 = vpop.permute.xlu0 %492
        %496 = vset.pattern.permute.xlu0 0
        %497 = vperm.xlu0 %496, %v487
        %v498 = vpop.permute.xlu0 %497
        %501 = vset.pattern.permute.xlu0 0
        %502 = vperm.xlu0 %501, %v488
        %v503 = vpop.permute.xlu0 %502
        %506 = vset.pattern.permute.xlu0 0
        %507 = vperm.xlu0 %506, %v489
        %v508 = vpop.permute.xlu0 %507
        %v514 = vunpack.c.l.b16 %v482
        %v515 = vunpack.c.l.b16 %v483
        %v516 = vunpack.c.l.b16 %v484
        %v517 = vunpack.c.l.b16 %v485
        %v518 = vpack.c.b16 %v515, %v514
        %v519 = vpack.c.b16 %v517, %v516
        %vm520 = vcmask 261120
        %v522 = vsel %vm520, %v518, 0
        %v525 = vsel %vm520, %v519, 0
        %527 = vmatprep.subr.bf16.mxu0 0
        %528 = vmatpush1.bf16.msra.mxu0 %v480
        %529 = vmatprep.subr.bf16.mxu0 0
        %530 = vmatpush1.bf16.msra.mxu0 %v481
        %531 = vmatprep.subr.bf16.mxu0 0
        %532 = vmatpush1.bf16.msra.mxu0 0
        %533 = vmatprep.subr.bf16.mxu0 0
        %534 = vmatpush1.bf16.msra.mxu0 0
        %535 = vmatprep.subr.bf16.mxu0 0
        %536 = vmatpush1.bf16.msra.mxu0 0
        %537 = vmatprep.subr.bf16.mxu0 0
        %538 = vmatpush1.bf16.msra.mxu0 0
        %539 = vmatprep.subr.bf16.mxu0 0
        %540 = vmatpush1.bf16.msra.mxu0 0
        %541 = vmatprep.subr.bf16.mxu0 0
        %542 = vmatpush1.bf16.msra.mxu0 0
        %543 = vmatprep.subr.bf16.mxu0 0
        %544 = vmatpush1.bf16.msra.mxu0 0
        %545 = vmatprep.subr.bf16.mxu0 0
        %546 = vmatpush1.bf16.msra.mxu0 0
        %547 = vmatprep.subr.bf16.mxu0 0
        %548 = vmatpush1.bf16.msra.mxu0 0
        %549 = vmatprep.subr.bf16.mxu0 0
        %550 = vmatpush1.bf16.msra.mxu0 0
        %551 = vmatprep.subr.bf16.mxu0 0
        %552 = vmatpush1.bf16.msra.mxu0 0
        %553 = vmatprep.subr.bf16.mxu0 0
        %554 = vmatpush1.bf16.msra.mxu0 0
        %555 = vmatprep.subr.bf16.mxu0 0
        %556 = vmatpush1.bf16.msra.mxu0 0
        %557 = vmatprep.subr.bf16.mxu0 0
        %558 = vmatpush1.bf16.msra.mxu0 0
        %559 = vmatprep.mubr.bf16.mxu0 0
        %560 = vmatmul.mubr.bf16.gmra.mrb[0].mxu0 %v522
        %v561 = vpop.f32.mrb[0].mxu0
        %v562 = vadd.f32 %v493, %v561
        %v563 = vpop.f32.mrb[0].mxu0
        %v564 = vpop.f32.mrb[0].mxu0
        %v565 = vadd.f32 %v498, %v564
        %v566 = vpop.f32.mrb[0].mxu0
        %567 = vmatprep.mubr.bf16.mxu0 0
        %568 = vmatmul.mubr.bf16.gmra.mrb[0].mxu0 %v525
        %v569 = vpop.f32.mrb[0].mxu0
        %v570 = vadd.f32 %v503, %v569
        %v571 = vpop.f32.mrb[0].mxu0
        %v572 = vpop.f32.mrb[0].mxu0
        %v573 = vadd.f32 %v508, %v572
        %v574 = vpop.f32.mrb[0].mxu0
        %575 = vdwg.mxu0
        %v576 = vld [vmem:[%s4] sm:$0xf]
        %v577 = vld [vmem:[%s4 + $0x4] sm:$0xf]
        %v578 = vld [vmem:[%s4 + $0x8] sm:$0xf]
        %v579 = vld [vmem:[%s4 + $0xc] sm:$0xf]
        %v580 = vld [vmem:[%s8] sm:$0xff]
        %v581 = vld [vmem:[%s8 + $0x8] sm:$0xff]
        %v582 = vld [vmem:[%s8 + $0x10] sm:$0xff]
        %v583 = vld [vmem:[%s8 + $0x18] sm:$0xff]
        %585 = vset.pattern.permute.xlu0 0
        %586 = vperm.xlu0 %585, %v580
        %v587 = vpop.permute.xlu0 %586
        %590 = vset.pattern.permute.xlu0 0
        %591 = vperm.xlu0 %590, %v581
        %v592 = vpop.permute.xlu0 %591
        %595 = vset.pattern.permute.xlu0 0
        %596 = vperm.xlu0 %595, %v582
        %v597 = vpop.permute.xlu0 %596
        %600 = vset.pattern.permute.xlu0 0
        %601 = vperm.xlu0 %600, %v583
        %v602 = vpop.permute.xlu0 %601
        %v608 = vunpack.c.l.b16 %v576
        %v609 = vunpack.c.l.b16 %v577
        %v610 = vunpack.c.l.b16 %v578
        %v611 = vunpack.c.l.b16 %v579
        %v612 = vpack.c.b16 %v609, %v608
        %v613 = vpack.c.b16 %v611, %v610
        %v615 = vsel %vm520, %v612, 0
        %v618 = vsel %vm520, %v613, 0
        %620 = vmatprep.subr.bf16.mxu0 0
        %621 = vmatpush1.bf16.msra.mxu0 %v480
        %622 = vmatprep.subr.bf16.mxu0 0
        %623 = vmatpush1.bf16.msra.mxu0 %v481
        %624 = vmatprep.subr.bf16.mxu0 0
        %625 = vmatpush1.bf16.msra.mxu0 0
        %626 = vmatprep.subr.bf16.mxu0 0
        %627 = vmatpush1.bf16.msra.mxu0 0
        %628 = vmatprep.subr.bf16.mxu0 0
        %629 = vmatpush1.bf16.msra.mxu0 0
        %630 = vmatprep.subr.bf16.mxu0 0
        %631 = vmatpush1.bf16.msra.mxu0 0
        %632 = vmatprep.subr.bf16.mxu0 0
        %633 = vmatpush1.bf16.msra.mxu0 0
        %634 = vmatprep.subr.bf16.mxu0 0
        %635 = vmatpush1.bf16.msra.mxu0 0
        %636 = vmatprep.subr.bf16.mxu0 0
        %637 = vmatpush1.bf16.msra.mxu0 0
        %638 = vmatprep.subr.bf16.mxu0 0
        %639 = vmatpush1.bf16.msra.mxu0 0
        %640 = vmatprep.subr.bf16.mxu0 0
        %641 = vmatpush1.bf16.msra.mxu0 0
        %642 = vmatprep.subr.bf16.mxu0 0
        %643 = vmatpush1.bf16.msra.mxu0 0
        %644 = vmatprep.subr.bf16.mxu0 0
        %645 = vmatpush1.bf16.msra.mxu0 0
        %646 = vmatprep.subr.bf16.mxu0 0
        %647 = vmatpush1.bf16.msra.mxu0 0
        %648 = vmatprep.subr.bf16.mxu0 0
        %649 = vmatpush1.bf16.msra.mxu0 0
        %650 = vmatprep.subr.bf16.mxu0 0
        %651 = vmatpush1.bf16.msra.mxu0 0
        %652 = vmatprep.mubr.bf16.mxu0 0
        %653 = vmatmul.mubr.bf16.gmra.mrb[0].mxu0 %v615
        %v654 = vpop.f32.mrb[0].mxu0
        %v655 = vadd.f32 %v587, %v654
        %v656 = vpop.f32.mrb[0].mxu0
        %v657 = vpop.f32.mrb[0].mxu0
        %v658 = vadd.f32 %v592, %v657
        %v659 = vpop.f32.mrb[0].mxu0
        %660 = vmatprep.mubr.bf16.mxu0 0
        %661 = vmatmul.mubr.bf16.gmra.mrb[0].mxu0 %v618
        %v662 = vpop.f32.mrb[0].mxu0
        %v663 = vadd.f32 %v597, %v662
        %v664 = vpop.f32.mrb[0].mxu0
        %v665 = vpop.f32.mrb[0].mxu0
        %v666 = vadd.f32 %v602, %v665
        %v667 = vpop.f32.mrb[0].mxu0
        %668 = vdwg.mxu0
        %v669 = vpack.c.bf16 %v562, %v562
        %v670 = vpack.c.bf16 %v565, %v565
        %v671 = vpack.c.bf16 %v570, %v570
        %v672 = vpack.c.bf16 %v573, %v573
        %vm673 = vcmask 191488
        %674 = vst.msk [vmem:[#allocation2] sm:$0xf] %vm673, %v669
        %675 = vst.msk [vmem:[#allocation2 + $0x4] sm:$0xf] %vm673, %v670
        %676 = vst.msk [vmem:[#allocation2 + $0x8] sm:$0xf] %vm673, %v671
        %677 = vst.msk [vmem:[#allocation2 + $0xc] sm:$0xf] %vm673, %v672
        %v678 = vpack.c.bf16 %v655, %v655
        %v679 = vpack.c.bf16 %v658, %v658
        %v680 = vpack.c.bf16 %v663, %v663
        %v681 = vpack.c.bf16 %v666, %v666
        %682 = vst.msk [vmem:[#allocation3] sm:$0xf] %vm673, %v678
        %683 = vst.msk [vmem:[#allocation3 + $0x4] sm:$0xf] %vm673, %v679
        %684 = vst.msk [vmem:[#allocation3 + $0x8] sm:$0xf] %vm673, %v680
        %685 = vst.msk [vmem:[#allocation3 + $0xc] sm:$0xf] %vm673, %v681
      $region68: #{tpu_custom_call.1} parent=63 // pred_fallthru
        _
      %v686 = vld [vmem:[%s447] sm:$0xff]
      %v687 = vld [vmem:[%s447 + $0x8] sm:$0xff]
      %v688 = vld [vmem:[%s447 + $0x10] sm:$0xff]
      %v689 = vld [vmem:[%s447 + $0x18] sm:$0xff]
      %v690 = vpack.c.bf16 %v687, %v686
      %v691 = vpack.c.bf16 %v689, %v688
      %v692 = vld [vmem:[%s2] sm:$0xf]
      %v693 = vld [vmem:[%s2 + $0x4] sm:$0xf]
      %v694 = vld [vmem:[%s2 + $0x8] sm:$0xf]
      %v695 = vld [vmem:[%s2 + $0xc] sm:$0xf]
      %v696 = vld [vmem:[%s6] sm:$0xff]
      %v697 = vld [vmem:[%s6 + $0x8] sm:$0xff]
      %v698 = vld [vmem:[%s6 + $0x10] sm:$0xff]
      %v699 = vld [vmem:[%s6 + $0x18] sm:$0xff]
      %701 = vset.pattern.permute.xlu0 0
      %702 = vperm.xlu0 %701, %v696
      %v703 = vpop.permute.xlu0 %702
      %706 = vset.pattern.permute.xlu0 0
      %707 = vperm.xlu0 %706, %v697
      %v708 = vpop.permute.xlu0 %707
      %711 = vset.pattern.permute.xlu0 0
      %712 = vperm.xlu0 %711, %v698
      %v713 = vpop.permute.xlu0 %712
      %716 = vset.pattern.permute.xlu0 0
      %717 = vperm.xlu0 %716, %v699
      %v718 = vpop.permute.xlu0 %717
      %v724 = vunpack.c.l.b16 %v692
      %v725 = vunpack.c.l.b16 %v693
      %v726 = vunpack.c.l.b16 %v694
      %v727 = vunpack.c.l.b16 %v695
      %v728 = vpack.c.b16 %v725, %v724
      %v729 = vpack.c.b16 %v727, %v726
      %vm730 = vcmask 261120
      %v732 = vsel %vm730, %v728, 0
      %v735 = vsel %vm730, %v729, 0
      %737 = vmatprep.subr.bf16.mxu0 0
      %738 = vmatpush1.bf16.msra.mxu0 %v690
      %739 = vmatprep.subr.bf16.mxu0 0
      %740 = vmatpush1.bf16.msra.mxu0 %v691
      %741 = vmatprep.subr.bf16.mxu0 0
      %742 = vmatpush1.bf16.msra.mxu0 0
      %743 = vmatprep.subr.bf16.mxu0 0
      %744 = vmatpush1.bf16.msra.mxu0 0
      %745 = vmatprep.subr.bf16.mxu0 0
      %746 = vmatpush1.bf16.msra.mxu0 0
      %747 = vmatprep.subr.bf16.mxu0 0
      %748 = vmatpush1.bf16.msra.mxu0 0
      %749 = vmatprep.subr.bf16.mxu0 0
      %750 = vmatpush1.bf16.msra.mxu0 0
      %751 = vmatprep.subr.bf16.mxu0 0
      %752 = vmatpush1.bf16.msra.mxu0 0
      %753 = vmatprep.subr.bf16.mxu0 0
      %754 = vmatpush1.bf16.msra.mxu0 0
      %755 = vmatprep.subr.bf16.mxu0 0
      %756 = vmatpush1.bf16.msra.mxu0 0
      %757 = vmatprep.subr.bf16.mxu0 0
      %758 = vmatpush1.bf16.msra.mxu0 0
      %759 = vmatprep.subr.bf16.mxu0 0
      %760 = vmatpush1.bf16.msra.mxu0 0
      %761 = vmatprep.subr.bf16.mxu0 0
      %762 = vmatpush1.bf16.msra.mxu0 0
      %763 = vmatprep.subr.bf16.mxu0 0
      %764 = vmatpush1.bf16.msra.mxu0 0
      %765 = vmatprep.subr.bf16.mxu0 0
      %766 = vmatpush1.bf16.msra.mxu0 0
      %767 = vmatprep.subr.bf16.mxu0 0
      %768 = vmatpush1.bf16.msra.mxu0 0
      %769 = vmatprep.mubr.bf16.mxu0 0
      %770 = vmatmul.mubr.bf16.gmra.mrb[0].mxu0 %v732
      %v771 = vpop.f32.mrb[0].mxu0
      %v772 = vadd.f32 %v703, %v771
      %v773 = vpop.f32.mrb[0].mxu0
      %v774 = vpop.f32.mrb[0].mxu0
      %v775 = vadd.f32 %v708, %v774
      %v776 = vpop.f32.mrb[0].mxu0
      %777 = vmatprep.mubr.bf16.mxu0 0
      %778 = vmatmul.mubr.bf16.gmra.mrb[0].mxu0 %v735
      %v779 = vpop.f32.mrb[0].mxu0
      %v780 = vadd.f32 %v713, %v779
      %v781 = vpop.f32.mrb[0].mxu0
      %v782 = vpop.f32.mrb[0].mxu0
      %v783 = vadd.f32 %v718, %v782
      %v784 = vpop.f32.mrb[0].mxu0
      %785 = vdwg.mxu0
      %v786 = vpack.c.bf16 %v772, %v772
      %vm787 = vcmask 122880
      %788 = vst.msk [vmem:[#allocation5] sm:$0x1] %vm787, -inf
      %789 = vst.msk [vmem:[#allocation6] sm:$0x1] %vm787, 0.0
      %vm790 = vcmask 130048
      %791 = vst.msk [vmem:[#allocation4] sm:$0xff] %vm790, 0.0
      %v792 = vld [vmem:[#allocation2] sm:$0xf]
      %v793 = vld [vmem:[#allocation3] sm:$0xf]
      %794 = vxpose.xlu0.c.b16.start [1/8] %v792, 128
      %795 = vxpose.xlu0.c.b16.cont [2/8] 0, 128
      %796 = vxpose.xlu0.c.b16.cont [3/8] 0, 128
      %797 = vxpose.xlu0.c.b16.cont [4/8] 0, 128
      %798 = vxpose.xlu0.c.b16.cont [5/8] 0, 128
      %799 = vxpose.xlu0.c.b16.cont [6/8] 0, 128
      %800 = vxpose.xlu0.c.b16.cont [7/8] 0, 128
      %801 = vxpose.xlu0.c.b16.end [8/8] 0, 128
      %v802 = vpop.trf.xlu0
      %v803 = vpop.trf.xlu0
      %v804 = vpop.trf.xlu0
      %v805 = vpop.trf.xlu0
      %v806 = vpop.trf.xlu0
      %v807 = vpop.trf.xlu0
      %v808 = vpop.trf.xlu0
      %v809 = vpop.trf.xlu0
      %vm810 = vcmask 64512
      %v812 = vsel %vm810, %v802, 0
      %v815 = vsel %vm810, %v803, 0
      %vm817 = vcmask 1043456
      %v819 = vsel %vm817, %v786, 0
      %821 = vmatprep.subr.bf16.mxu0 0
      %822 = vmatpush1.bf16.msra.mxu0 %v819
      %823 = vmatprep.subr.bf16.mxu0 0
      %824 = vmatpush1.bf16.msra.mxu0 0
      %825 = vmatprep.subr.bf16.mxu0 0
      %826 = vmatpush1.bf16.msra.mxu0 0
      %827 = vmatprep.subr.bf16.mxu0 0
      %828 = vmatpush1.bf16.msra.mxu0 0
      %829 = vmatprep.subr.bf16.mxu0 0
      %830 = vmatpush1.bf16.msra.mxu0 0
      %831 = vmatprep.subr.bf16.mxu0 0
      %832 = vmatpush1.bf16.msra.mxu0 0
      %833 = vmatprep.subr.bf16.mxu0 0
      %834 = vmatpush1.bf16.msra.mxu0 0
      %835 = vmatprep.subr.bf16.mxu0 0
      %836 = vmatpush1.bf16.msra.mxu0 0
      %837 = vmatprep.subr.bf16.mxu0 0
      %838 = vmatpush1.bf16.msra.mxu0 0
      %839 = vmatprep.subr.bf16.mxu0 0
      %840 = vmatpush1.bf16.msra.mxu0 0
      %841 = vmatprep.subr.bf16.mxu0 0
      %842 = vmatpush1.bf16.msra.mxu0 0
      %843 = vmatprep.subr.bf16.mxu0 0
      %844 = vmatpush1.bf16.msra.mxu0 0
      %845 = vmatprep.subr.bf16.mxu0 0
      %846 = vmatpush1.bf16.msra.mxu0 0
      %847 = vmatprep.subr.bf16.mxu0 0
      %848 = vmatpush1.bf16.msra.mxu0 0
      %849 = vmatprep.subr.bf16.mxu0 0
      %850 = vmatpush1.bf16.msra.mxu0 0
      %851 = vmatprep.subr.bf16.mxu0 0
      %852 = vmatpush1.bf16.msra.mxu0 0
      %853 = vmatprep.mubr.bf16.mxu0 0
      %854 = vmatmul.mubr.bf16.gmra.mrb[0].mxu0 %v812
      %v855 = vpop.f32.mrb[0].mxu0
      %v856 = vadd.f32 0.0, %v855
      %v857 = vpop.f32.mrb[0].mxu0
      %v858 = vpop.f32.mrb[0].mxu0
      %v859 = vadd.f32 0.0, %v858
      %v860 = vpop.f32.mrb[0].mxu0
      %861 = vmatprep.mubr.bf16.mxu0 0
      %862 = vmatmul.mubr.bf16.gmra.mrb[0].mxu0 %v815
      %v863 = vpop.f32.mrb[0].mxu0
      %v864 = vadd.f32 0.0, %v863
      %v865 = vpop.f32.mrb[0].mxu0
      %v866 = vpop.f32.mrb[0].mxu0
      %v867 = vpop.f32.mrb[0].mxu0
      %868 = vdwg.mxu0
      %v869 = vld [vmem:[%s460] sm:$0x3]
      %v870 = vld [vmem:[%s460 + $0x2] sm:$0x3]
      %v871 = vld [vmem:[%s460 + $0x4] sm:$0x3]
      %vm872 = vnez %v869
      %vm873 = vnez %v870
      %vm874 = vnez %v871
      %v875 = vsel %vm872, 16843009, 0
      %v876 = vsel %vm873, 16843009, 0
      %v877 = vsel %vm874, 16843009, 0
      %v878 = vunpack.c.0.s8 %v875
      %v879 = vunpack.c.0.s8 %v876
      %v880 = vunpack.c.0.s8 %v877
      %vm881 = vcmp.ne.s32.totalorder %v878, 0
      %vm882 = vcmp.ne.s32.totalorder %v879, 0
      %vm883 = vcmp.ne.s32.totalorder %v880, 0
      %v884 = vsel %vm881, %v856, -10000.0
      %v885 = vsel %vm882, %v859, -10000.0
      %v886 = vsel %vm883, %v864, -10000.0
      %v887 = vld [vmem:[#allocation5] sm:$0x1]
      %v888 = vsel %vm790, %v884, -inf
      %v889 = vsel %vm790, %v885, -inf
      %v890 = vsel %vm790, %v886, -inf
      %v891 = vmax.f32 %v888, %v889
      %v892 = vmax.f32 %v891, %v890
      %v893 = vrot.slane %v892, 4
      %v894 = vmax.f32 %v892, %v893
      %v895 = vrot.slane %v894, 2
      %v896 = vmax.f32 %v894, %v895
      %v897 = vrot.slane %v896, 1
      %v898 = vmax.f32 %v896, %v897
      %v899 = vmax.f32 %v887, %v898
      %v900 = vsub.f32 %v887, %v899
      %v901 = vmul.f32 %v900, 1.442695
      %v902 = vpow.pop %v901
      %v904 = vlaneseq
      %v905 = vshrl.u32 %v904, 7
      %v906 = vsub.s32 0, %v905
      %v907 = vrot.slane %v899, %v906
      %v909 = vsub.f32 %v884, %v907
      %v910 = vsub.f32 %v885, %v907
      %v911 = vsub.f32 %v886, %v907
      %v912 = vmul.f32 %v909, 1.442695
      %v913 = vpow.pop %v912
      %v914 = vmul.f32 %v910, 1.442695
      %v915 = vpow.pop %v914
      %v916 = vmul.f32 %v911, 1.442695
      %v917 = vpow.pop %v916
      %v918 = vld [vmem:[#allocation6] sm:$0x1]
      %v919 = vmul.f32 %v902, %v918
      %v920 = vsel %vm790, %v913, 0.0
      %v921 = vsel %vm790, %v915, 0.0
      %v922 = vadd.f32 %v920, %v921
      %v923 = vsel %vm790, %v917, 0.0
      %v924 = vadd.f32 %v922, %v923
      %v925 = vrot.slane %v924, 4
      %v926 = vadd.f32 %v924, %v925
      %v927 = vrot.slane %v926, 2
      %v928 = vadd.f32 %v926, %v927
      %v929 = vrot.slane %v928, 1
      %v930 = vadd.f32 %v928, %v929
      %v931 = vadd.f32 %v919, %v930
      %932 = vst.msk [vmem:[#allocation6] sm:$0x1] %vm787, %v931
      %v933 = vld [vmem:[#allocation4] sm:$0xff]
      %v935 = vlaneseq
      %v936 = vshrl.u32 %v935, 7
      %v937 = vsub.s32 0, %v936
      %v938 = vrot.slane %v902, %v937
      %v940 = vmul.f32 %v938, %v933
      %v941 = vpack.c.bf16 %v915, %v913
      %v942 = vpack.c.bf16 %v917, %v917
      %vm943 = vcmask 195584
      %v945 = vsel %vm943, %v793, 0
      %v948 = vsel %vm817, %v942, 0
      %950 = vmatprep.subr.bf16.mxu0 0
      %951 = vmatpush1.bf16.msra.mxu0 %v941
      %952 = vmatprep.subr.bf16.mxu0 0
      %953 = vmatpush1.bf16.msra.mxu0 %v948
      %954 = vmatprep.subr.bf16.mxu0 0
      %955 = vmatpush1.bf16.msra.mxu0 0
      %956 = vmatprep.subr.bf16.mxu0 0
      %957 = vmatpush1.bf16.msra.mxu0 0
      %958 = vmatprep.subr.bf16.mxu0 0
      %959 = vmatpush1.bf16.msra.mxu0 0
      %960 = vmatprep.subr.bf16.mxu0 0
      %961 = vmatpush1.bf16.msra.mxu0 0
      %962 = vmatprep.subr.bf16.mxu0 0
      %963 = vmatpush1.bf16.msra.mxu0 0
      %964 = vmatprep.subr.bf16.mxu0 0
      %965 = vmatpush1.bf16.msra.mxu0 0
      %966 = vmatprep.subr.bf16.mxu0 0
      %967 = vmatpush1.bf16.msra.mxu0 0
      %968 = vmatprep.subr.bf16.mxu0 0
      %969 = vmatpush1.bf16.msra.mxu0 0
      %970 = vmatprep.subr.bf16.mxu0 0
      %971 = vmatpush1.bf16.msra.mxu0 0
      %972 = vmatprep.subr.bf16.mxu0 0
      %973 = vmatpush1.bf16.msra.mxu0 0
      %974 = vmatprep.subr.bf16.mxu0 0
      %975 = vmatpush1.bf16.msra.mxu0 0
      %976 = vmatprep.subr.bf16.mxu0 0
      %977 = vmatpush1.bf16.msra.mxu0 0
      %978 = vmatprep.subr.bf16.mxu0 0
      %979 = vmatpush1.bf16.msra.mxu0 0
      %980 = vmatprep.subr.bf16.mxu0 0
      %981 = vmatpush1.bf16.msra.mxu0 0
      %982 = vmatprep.mubr.bf16.mxu0 0
      %983 = vmatmul.mubr.bf16.gmra.mrb[0].mxu0 %v945
      %v984 = vpop.f32.mrb[0].mxu0
      %v985 = vadd.f32 0.0, %v984
      %v986 = vpop.f32.mrb[0].mxu0
      %v987 = vpop.f32.mrb[0].mxu0
      %v988 = vpop.f32.mrb[0].mxu0
      %989 = vdwg.mxu0
      %v990 = vadd.f32 %v940, %v985
      %991 = vst.msk [vmem:[#allocation4] sm:$0xff] %vm790, %v990
      %992 = vst.msk [vmem:[#allocation5] sm:$0x1] %vm787, %v899
      %v993 = vpack.c.bf16 %v775, %v775
      %s994 = scalar_lea.vmem [#allocation5], 1
      %995 = vst.msk [vmem:[%s994] sm:$0x1] %vm787, -inf
      %s996 = scalar_lea.vmem [#allocation6], 1
      %997 = vst.msk [vmem:[%s996] sm:$0x1] %vm787, 0.0
      %s998 = scalar_lea.vmem [#allocation4], 8
      %999 = vst.msk [vmem:[%s998] sm:$0xff] %vm790, 0.0
      %s1000 = scalar_lea.vmem [#allocation2], 4
      %v1001 = vld [vmem:[%s1000] sm:$0xf]
      %s1002 = scalar_lea.vmem [#allocation3], 4
      %v1003 = vld [vmem:[%s1002] sm:$0xf]
      %1004 = vxpose.xlu0.c.b16.start [1/8] %v1001, 128
      %1005 = vxpose.xlu0.c.b16.cont [2/8] 0, 128
      %1006 = vxpose.xlu0.c.b16.cont [3/8] 0, 128
      %1007 = vxpose.xlu0.c.b16.cont [4/8] 0, 128
      %1008 = vxpose.xlu0.c.b16.cont [5/8] 0, 128
      %1009 = vxpose.xlu0.c.b16.cont [6/8] 0, 128
      %1010 = vxpose.xlu0.c.b16.cont [7/8] 0, 128
      %1011 = vxpose.xlu0.c.b16.end [8/8] 0, 128
      %v1012 = vpop.trf.xlu0
      %v1013 = vpop.trf.xlu0
      %v1014 = vpop.trf.xlu0
      %v1015 = vpop.trf.xlu0
      %v1016 = vpop.trf.xlu0
      %v1017 = vpop.trf.xlu0
      %v1018 = vpop.trf.xlu0
      %v1019 = vpop.trf.xlu0
      %v1021 = vsel %vm810, %v1012, 0
      %v1024 = vsel %vm810, %v1013, 0
      %v1027 = vsel %vm817, %v993, 0
      %1029 = vmatprep.subr.bf16.mxu0 0
      %1030 = vmatpush1.bf16.msra.mxu0 %v1027
      %1031 = vmatprep.subr.bf16.mxu0 0
      %1032 = vmatpush1.bf16.msra.mxu0 0
      %1033 = vmatprep.subr.bf16.mxu0 0
      %1034 = vmatpush1.bf16.msra.mxu0 0
      %1035 = vmatprep.subr.bf16.mxu0 0
      %1036 = vmatpush1.bf16.msra.mxu0 0
      %1037 = vmatprep.subr.bf16.mxu0 0
      %1038 = vmatpush1.bf16.msra.mxu0 0
      %1039 = vmatprep.subr.bf16.mxu0 0
      %1040 = vmatpush1.bf16.msra.mxu0 0
      %1041 = vmatprep.subr.bf16.mxu0 0
      %1042 = vmatpush1.bf16.msra.mxu0 0
      %1043 = vmatprep.subr.bf16.mxu0 0
      %1044 = vmatpush1.bf16.msra.mxu0 0
      %1045 = vmatprep.subr.bf16.mxu0 0
      %1046 = vmatpush1.bf16.msra.mxu0 0
      %1047 = vmatprep.subr.bf16.mxu0 0
      %1048 = vmatpush1.bf16.msra.mxu0 0
      %1049 = vmatprep.subr.bf16.mxu0 0
      %1050 = vmatpush1.bf16.msra.mxu0 0
      %1051 = vmatprep.subr.bf16.mxu0 0
      %1052 = vmatpush1.bf16.msra.mxu0 0
      %1053 = vmatprep.subr.bf16.mxu0 0
      %1054 = vmatpush1.bf16.msra.mxu0 0
      %1055 = vmatprep.subr.bf16.mxu0 0
      %1056 = vmatpush1.bf16.msra.mxu0 0
      %1057 = vmatprep.subr.bf16.mxu0 0
      %1058 = vmatpush1.bf16.msra.mxu0 0
      %1059 = vmatprep.subr.bf16.mxu0 0
      %1060 = vmatpush1.bf16.msra.mxu0 0
      %1061 = vmatprep.mubr.bf16.mxu0 0
      %1062 = vmatmul.mubr.bf16.gmra.mrb[0].mxu0 %v1021
      %v1063 = vpop.f32.mrb[0].mxu0
      %v1064 = vadd.f32 0.0, %v1063
      %v1065 = vpop.f32.mrb[0].mxu0
      %v1066 = vpop.f32.mrb[0].mxu0
      %v1067 = vadd.f32 0.0, %v1066
      %v1068 = vpop.f32.mrb[0].mxu0
      %1069 = vmatprep.mubr.bf16.mxu0 0
      %1070 = vmatmul.mubr.bf16.gmra.mrb[0].mxu0 %v1024
      %v1071 = vpop.f32.mrb[0].mxu0
      %v1072 = vadd.f32 0.0, %v1071
      %v1073 = vpop.f32.mrb[0].mxu0
      %v1074 = vpop.f32.mrb[0].mxu0
      %v1075 = vpop.f32.mrb[0].mxu0
      %1076 = vdwg.mxu0
      %v1077 = vld [vmem:[%s460] sm:$0x3]
      %v1078 = vld [vmem:[%s460 + $0x2] sm:$0x3]
      %v1079 = vld [vmem:[%s460 + $0x4] sm:$0x3]
      %vm1080 = vnez %v1077
      %vm1081 = vnez %v1078
      %vm1082 = vnez %v1079
      %v1083 = vsel %vm1080, 16843009, 0
      %v1084 = vsel %vm1081, 16843009, 0
      %v1085 = vsel %vm1082, 16843009, 0
      %v1086 = vunpack.c.0.s8 %v1083
      %v1087 = vunpack.c.0.s8 %v1084
      %v1088 = vunpack.c.0.s8 %v1085
      %vm1089 = vcmp.ne.s32.totalorder %v1086, 0
      %vm1090 = vcmp.ne.s32.totalorder %v1087, 0
      %vm1091 = vcmp.ne.s32.totalorder %v1088, 0
      %v1092 = vsel %vm1089, %v1064, -10000.0
      %v1093 = vsel %vm1090, %v1067, -10000.0
      %v1094 = vsel %vm1091, %v1072, -10000.0
      %v1095 = vld [vmem:[%s994] sm:$0x1]
      %v1096 = vsel %vm790, %v1092, -inf
      %v1097 = vsel %vm790, %v1093, -inf
      %v1098 = vsel %vm790, %v1094, -inf
      %v1099 = vmax.f32 %v1096, %v1097
      %v1100 = vmax.f32 %v1099, %v1098
      %v1101 = vrot.slane %v1100, 4
      %v1102 = vmax.f32 %v1100, %v1101
      %v1103 = vrot.slane %v1102, 2
      %v1104 = vmax.f32 %v1102, %v1103
      %v1105 = vrot.slane %v1104, 1
      %v1106 = vmax.f32 %v1104, %v1105
      %v1107 = vmax.f32 %v1095, %v1106
      %v1108 = vsub.f32 %v1095, %v1107
      %v1109 = vmul.f32 %v1108, 1.442695
      %v1110 = vpow.pop %v1109
      %v1112 = vlaneseq
      %v1113 = vshrl.u32 %v1112, 7
      %v1114 = vsub.s32 0, %v1113
      %v1115 = vrot.slane %v1107, %v1114
      %v1117 = vsub.f32 %v1092, %v1115
      %v1118 = vsub.f32 %v1093, %v1115
      %v1119 = vsub.f32 %v1094, %v1115
      %v1120 = vmul.f32 %v1117, 1.442695
      %v1121 = vpow.pop %v1120
      %v1122 = vmul.f32 %v1118, 1.442695
      %v1123 = vpow.pop %v1122
      %v1124 = vmul.f32 %v1119, 1.442695
      %v1125 = vpow.pop %v1124
      %v1126 = vld [vmem:[%s996] sm:$0x1]
      %v1127 = vmul.f32 %v1110, %v1126
      %v1128 = vsel %vm790, %v1121, 0.0
      %v1129 = vsel %vm790, %v1123, 0.0
      %v1130 = vadd.f32 %v1128, %v1129
      %v1131 = vsel %vm790, %v1125, 0.0
      %v1132 = vadd.f32 %v1130, %v1131
      %v1133 = vrot.slane %v1132, 4
      %v1134 = vadd.f32 %v1132, %v1133
      %v1135 = vrot.slane %v1134, 2
      %v1136 = vadd.f32 %v1134, %v1135
      %v1137 = vrot.slane %v1136, 1
      %v1138 = vadd.f32 %v1136, %v1137
      %v1139 = vadd.f32 %v1127, %v1138
      %1140 = vst.msk [vmem:[%s996] sm:$0x1] %vm787, %v1139
      %v1141 = vld [vmem:[%s998] sm:$0xff]
      %v1143 = vlaneseq
      %v1144 = vshrl.u32 %v1143, 7
      %v1145 = vsub.s32 0, %v1144
      %v1146 = vrot.slane %v1110, %v1145
      %v1148 = vmul.f32 %v1146, %v1141
      %v1149 = vpack.c.bf16 %v1123, %v1121
      %v1150 = vpack.c.bf16 %v1125, %v1125
      %v1152 = vsel %vm943, %v1003, 0
      %v1155 = vsel %vm817, %v1150, 0
      %1157 = vmatprep.subr.bf16.mxu0 0
      %1158 = vmatpush1.bf16.msra.mxu0 %v1149
      %1159 = vmatprep.subr.bf16.mxu0 0
      %1160 = vmatpush1.bf16.msra.mxu0 %v1155
      %1161 = vmatprep.subr.bf16.mxu0 0
      %1162 = vmatpush1.bf16.msra.mxu0 0
      %1163 = vmatprep.subr.bf16.mxu0 0
      %1164 = vmatpush1.bf16.msra.mxu0 0
      %1165 = vmatprep.subr.bf16.mxu0 0
      %1166 = vmatpush1.bf16.msra.mxu0 0
      %1167 = vmatprep.subr.bf16.mxu0 0
      %1168 = vmatpush1.bf16.msra.mxu0 0
      %1169 = vmatprep.subr.bf16.mxu0 0
      %1170 = vmatpush1.bf16.msra.mxu0 0
      %1171 = vmatprep.subr.bf16.mxu0 0
      %1172 = vmatpush1.bf16.msra.mxu0 0
      %1173 = vmatprep.subr.bf16.mxu0 0
      %1174 = vmatpush1.bf16.msra.mxu0 0
      %1175 = vmatprep.subr.bf16.mxu0 0
      %1176 = vmatpush1.bf16.msra.mxu0 0
      %1177 = vmatprep.subr.bf16.mxu0 0
      %1178 = vmatpush1.bf16.msra.mxu0 0
      %1179 = vmatprep.subr.bf16.mxu0 0
      %1180 = vmatpush1.bf16.msra.mxu0 0
      %1181 = vmatprep.subr.bf16.mxu0 0
      %1182 = vmatpush1.bf16.msra.mxu0 0
      %1183 = vmatprep.subr.bf16.mxu0 0
      %1184 = vmatpush1.bf16.msra.mxu0 0
      %1185 = vmatprep.subr.bf16.mxu0 0
      %1186 = vmatpush1.bf16.msra.mxu0 0
      %1187 = vmatprep.subr.bf16.mxu0 0
      %1188 = vmatpush1.bf16.msra.mxu0 0
      %1189 = vmatprep.mubr.bf16.mxu0 0
      %1190 = vmatmul.mubr.bf16.gmra.mrb[0].mxu0 %v1152
      %v1191 = vpop.f32.mrb[0].mxu0
      %v1192 = vadd.f32 0.0, %v1191
      %v1193 = vpop.f32.mrb[0].mxu0
      %v1194 = vpop.f32.mrb[0].mxu0
      %v1195 = vpop.f32.mrb[0].mxu0
      %1196 = vdwg.mxu0
      %v1197 = vadd.f32 %v1148, %v1192
      %1198 = vst.msk [vmem:[%s998] sm:$0xff] %vm790, %v1197
      %1199 = vst.msk [vmem:[%s994] sm:$0x1] %vm787, %v1107
      %v1200 = vpack.c.bf16 %v780, %v780
      %s1201 = scalar_lea.vmem [#allocation5], 2
      %1202 = vst.msk [vmem:[%s1201] sm:$0x1] %vm787, -inf
      %s1203 = scalar_lea.vmem [#allocation6], 2
      %1204 = vst.msk [vmem:[%s1203] sm:$0x1] %vm787, 0.0
      %s1205 = scalar_lea.vmem [#allocation4], 16
      %1206 = vst.msk [vmem:[%s1205] sm:$0xff] %vm790, 0.0
      %s1207 = scalar_lea.vmem [#allocation2], 8
      %v1208 = vld [vmem:[%s1207] sm:$0xf]
      %s1209 = scalar_lea.vmem [#allocation3], 8
      %v1210 = vld [vmem:[%s1209] sm:$0xf]
      %1211 = vxpose.xlu0.c.b16.start [1/8] %v1208, 128
      %1212 = vxpose.xlu0.c.b16.cont [2/8] 0, 128
      %1213 = vxpose.xlu0.c.b16.cont [3/8] 0, 128
      %1214 = vxpose.xlu0.c.b16.cont [4/8] 0, 128
      %1215 = vxpose.xlu0.c.b16.cont [5/8] 0, 128
      %1216 = vxpose.xlu0.c.b16.cont [6/8] 0, 128
      %1217 = vxpose.xlu0.c.b16.cont [7/8] 0, 128
      %1218 = vxpose.xlu0.c.b16.end [8/8] 0, 128
      %v1219 = vpop.trf.xlu0
      %v1220 = vpop.trf.xlu0
      %v1221 = vpop.trf.xlu0
      %v1222 = vpop.trf.xlu0
      %v1223 = vpop.trf.xlu0
      %v1224 = vpop.trf.xlu0
      %v1225 = vpop.trf.xlu0
      %v1226 = vpop.trf.xlu0
      %v1228 = vsel %vm810, %v1219, 0
      %v1231 = vsel %vm810, %v1220, 0
      %v1234 = vsel %vm817, %v1200, 0
      %1236 = vmatprep.subr.bf16.mxu0 0
      %1237 = vmatpush1.bf16.msra.mxu0 %v1234
      %1238 = vmatprep.subr.bf16.mxu0 0
      %1239 = vmatpush1.bf16.msra.mxu0 0
      %1240 = vmatprep.subr.bf16.mxu0 0
      %1241 = vmatpush1.bf16.msra.mxu0 0
      %1242 = vmatprep.subr.bf16.mxu0 0
      %1243 = vmatpush1.bf16.msra.mxu0 0
      %1244 = vmatprep.subr.bf16.mxu0 0
      %1245 = vmatpush1.bf16.msra.mxu0 0
      %1246 = vmatprep.subr.bf16.mxu0 0
      %1247 = vmatpush1.bf16.msra.mxu0 0
      %1248 = vmatprep.subr.bf16.mxu0 0
      %1249 = vmatpush1.bf16.msra.mxu0 0
      %1250 = vmatprep.subr.bf16.mxu0 0
      %1251 = vmatpush1.bf16.msra.mxu0 0
      %1252 = vmatprep.subr.bf16.mxu0 0
      %1253 = vmatpush1.bf16.msra.mxu0 0
      %1254 = vmatprep.subr.bf16.mxu0 0
      %1255 = vmatpush1.bf16.msra.mxu0 0
      %1256 = vmatprep.subr.bf16.mxu0 0
      %1257 = vmatpush1.bf16.msra.mxu0 0
      %1258 = vmatprep.subr.bf16.mxu0 0
      %1259 = vmatpush1.bf16.msra.mxu0 0
      %1260 = vmatprep.subr.bf16.mxu0 0
      %1261 = vmatpush1.bf16.msra.mxu0 0
      %1262 = vmatprep.subr.bf16.mxu0 0
      %1263 = vmatpush1.bf16.msra.mxu0 0
      %1264 = vmatprep.subr.bf16.mxu0 0
      %1265 = vmatpush1.bf16.msra.mxu0 0
      %1266 = vmatprep.subr.bf16.mxu0 0
      %1267 = vmatpush1.bf16.msra.mxu0 0
      %1268 = vmatprep.mubr.bf16.mxu0 0
      %1269 = vmatmul.mubr.bf16.gmra.mrb[0].mxu0 %v1228
      %v1270 = vpop.f32.mrb[0].mxu0
      %v1271 = vadd.f32 0.0, %v1270
      %v1272 = vpop.f32.mrb[0].mxu0
      %v1273 = vpop.f32.mrb[0].mxu0
      %v1274 = vadd.f32 0.0, %v1273
      %v1275 = vpop.f32.mrb[0].mxu0
      %1276 = vmatprep.mubr.bf16.mxu0 0
      %1277 = vmatmul.mubr.bf16.gmra.mrb[0].mxu0 %v1231
      %v1278 = vpop.f32.mrb[0].mxu0
      %v1279 = vadd.f32 0.0, %v1278
      %v1280 = vpop.f32.mrb[0].mxu0
      %v1281 = vpop.f32.mrb[0].mxu0
      %v1282 = vpop.f32.mrb[0].mxu0
      %1283 = vdwg.mxu0
      %v1284 = vld [vmem:[%s460] sm:$0x3]
      %v1285 = vld [vmem:[%s460 + $0x2] sm:$0x3]
      %v1286 = vld [vmem:[%s460 + $0x4] sm:$0x3]
      %vm1287 = vnez %v1284
      %vm1288 = vnez %v1285
      %vm1289 = vnez %v1286
      %v1290 = vsel %vm1287, 16843009, 0
      %v1291 = vsel %vm1288, 16843009, 0
      %v1292 = vsel %vm1289, 16843009, 0
      %v1293 = vunpack.c.0.s8 %v1290
      %v1294 = vunpack.c.0.s8 %v1291
      %v1295 = vunpack.c.0.s8 %v1292
      %vm1296 = vcmp.ne.s32.totalorder %v1293, 0
      %vm1297 = vcmp.ne.s32.totalorder %v1294, 0
      %vm1298 = vcmp.ne.s32.totalorder %v1295, 0
      %v1299 = vsel %vm1296, %v1271, -10000.0
      %v1300 = vsel %vm1297, %v1274, -10000.0
      %v1301 = vsel %vm1298, %v1279, -10000.0
      %v1302 = vld [vmem:[%s1201] sm:$0x1]
      %v1303 = vsel %vm790, %v1299, -inf
      %v1304 = vsel %vm790, %v1300, -inf
      %v1305 = vsel %vm790, %v1301, -inf
      %v1306 = vmax.f32 %v1303, %v1304
      %v1307 = vmax.f32 %v1306, %v1305
      %v1308 = vrot.slane %v1307, 4
      %v1309 = vmax.f32 %v1307, %v1308
      %v1310 = vrot.slane %v1309, 2
      %v1311 = vmax.f32 %v1309, %v1310
      %v1312 = vrot.slane %v1311, 1
      %v1313 = vmax.f32 %v1311, %v1312
      %v1314 = vmax.f32 %v1302, %v1313
      %v1315 = vsub.f32 %v1302, %v1314
      %v1316 = vmul.f32 %v1315, 1.442695
      %v1317 = vpow.pop %v1316
      %v1319 = vlaneseq
      %v1320 = vshrl.u32 %v1319, 7
      %v1321 = vsub.s32 0, %v1320
      %v1322 = vrot.slane %v1314, %v1321
      %v1324 = vsub.f32 %v1299, %v1322
      %v1325 = vsub.f32 %v1300, %v1322
      %v1326 = vsub.f32 %v1301, %v1322
      %v1327 = vmul.f32 %v1324, 1.442695
      %v1328 = vpow.pop %v1327
      %v1329 = vmul.f32 %v1325, 1.442695
      %v1330 = vpow.pop %v1329
      %v1331 = vmul.f32 %v1326, 1.442695
      %v1332 = vpow.pop %v1331
      %v1333 = vld [vmem:[%s1203] sm:$0x1]
      %v1334 = vmul.f32 %v1317, %v1333
      %v1335 = vsel %vm790, %v1328, 0.0
      %v1336 = vsel %vm790, %v1330, 0.0
      %v1337 = vadd.f32 %v1335, %v1336
      %v1338 = vsel %vm790, %v1332, 0.0
      %v1339 = vadd.f32 %v1337, %v1338
      %v1340 = vrot.slane %v1339, 4
      %v1341 = vadd.f32 %v1339, %v1340
      %v1342 = vrot.slane %v1341, 2
      %v1343 = vadd.f32 %v1341, %v1342
      %v1344 = vrot.slane %v1343, 1
      %v1345 = vadd.f32 %v1343, %v1344
      %v1346 = vadd.f32 %v1334, %v1345
      %1347 = vst.msk [vmem:[%s1203] sm:$0x1] %vm787, %v1346
      %v1348 = vld [vmem:[%s1205] sm:$0xff]
      %v1350 = vlaneseq
      %v1351 = vshrl.u32 %v1350, 7
      %v1352 = vsub.s32 0, %v1351
      %v1353 = vrot.slane %v1317, %v1352
      %v1355 = vmul.f32 %v1353, %v1348
      %v1356 = vpack.c.bf16 %v1330, %v1328
      %v1357 = vpack.c.bf16 %v1332, %v1332
      %v1359 = vsel %vm943, %v1210, 0
      %v1362 = vsel %vm817, %v1357, 0
      %1364 = vmatprep.subr.bf16.mxu0 0
      %1365 = vmatpush1.bf16.msra.mxu0 %v1356
      %1366 = vmatprep.subr.bf16.mxu0 0
      %1367 = vmatpush1.bf16.msra.mxu0 %v1362
      %1368 = vmatprep.subr.bf16.mxu0 0
      %1369 = vmatpush1.bf16.msra.mxu0 0
      %1370 = vmatprep.subr.bf16.mxu0 0
      %1371 = vmatpush1.bf16.msra.mxu0 0
      %1372 = vmatprep.subr.bf16.mxu0 0
      %1373 = vmatpush1.bf16.msra.mxu0 0
      %1374 = vmatprep.subr.bf16.mxu0 0
      %1375 = vmatpush1.bf16.msra.mxu0 0
      %1376 = vmatprep.subr.bf16.mxu0 0
      %1377 = vmatpush1.bf16.msra.mxu0 0
      %1378 = vmatprep.subr.bf16.mxu0 0
      %1379 = vmatpush1.bf16.msra.mxu0 0
      %1380 = vmatprep.subr.bf16.mxu0 0
      %1381 = vmatpush1.bf16.msra.mxu0 0
      %1382 = vmatprep.subr.bf16.mxu0 0
      %1383 = vmatpush1.bf16.msra.mxu0 0
      %1384 = vmatprep.subr.bf16.mxu0 0
      %1385 = vmatpush1.bf16.msra.mxu0 0
      %1386 = vmatprep.subr.bf16.mxu0 0
      %1387 = vmatpush1.bf16.msra.mxu0 0
      %1388 = vmatprep.subr.bf16.mxu0 0
      %1389 = vmatpush1.bf16.msra.mxu0 0
      %1390 = vmatprep.subr.bf16.mxu0 0
      %1391 = vmatpush1.bf16.msra.mxu0 0
      %1392 = vmatprep.subr.bf16.mxu0 0
      %1393 = vmatpush1.bf16.msra.mxu0 0
      %1394 = vmatprep.subr.bf16.mxu0 0
      %1395 = vmatpush1.bf16.msra.mxu0 0
      %1396 = vmatprep.mubr.bf16.mxu0 0
      %1397 = vmatmul.mubr.bf16.gmra.mrb[0].mxu0 %v1359
      %v1398 = vpop.f32.mrb[0].mxu0
      %v1399 = vadd.f32 0.0, %v1398
      %v1400 = vpop.f32.mrb[0].mxu0
      %v1401 = vpop.f32.mrb[0].mxu0
      %v1402 = vpop.f32.mrb[0].mxu0
      %1403 = vdwg.mxu0
      %v1404 = vadd.f32 %v1355, %v1399
      %1405 = vst.msk [vmem:[%s1205] sm:$0xff] %vm790, %v1404
      %1406 = vst.msk [vmem:[%s1201] sm:$0x1] %vm787, %v1314
      %v1407 = vpack.c.bf16 %v783, %v783
      %s1408 = scalar_lea.vmem [#allocation5], 3
      %1409 = vst.msk [vmem:[%s1408] sm:$0x1] %vm787, -inf
      %s1410 = scalar_lea.vmem [#allocation6], 3
      %1411 = vst.msk [vmem:[%s1410] sm:$0x1] %vm787, 0.0
      %s1412 = scalar_lea.vmem [#allocation4], 24
      %1413 = vst.msk [vmem:[%s1412] sm:$0xff] %vm790, 0.0
      %s1414 = scalar_lea.vmem [#allocation2], 12
      %v1415 = vld [vmem:[%s1414] sm:$0xf]
      %s1416 = scalar_lea.vmem [#allocation3], 12
      %v1417 = vld [vmem:[%s1416] sm:$0xf]
      %1418 = vxpose.xlu0.c.b16.start [1/8] %v1415, 128
      %1419 = vxpose.xlu0.c.b16.cont [2/8] 0, 128
      %1420 = vxpose.xlu0.c.b16.cont [3/8] 0, 128
      %1421 = vxpose.xlu0.c.b16.cont [4/8] 0, 128
      %1422 = vxpose.xlu0.c.b16.cont [5/8] 0, 128
      %1423 = vxpose.xlu0.c.b16.cont [6/8] 0, 128
      %1424 = vxpose.xlu0.c.b16.cont [7/8] 0, 128
      %1425 = vxpose.xlu0.c.b16.end [8/8] 0, 128
      %v1426 = vpop.trf.xlu0
      %v1427 = vpop.trf.xlu0
      %v1428 = vpop.trf.xlu0
      %v1429 = vpop.trf.xlu0
      %v1430 = vpop.trf.xlu0
      %v1431 = vpop.trf.xlu0
      %v1432 = vpop.trf.xlu0
      %v1433 = vpop.trf.xlu0
      %v1435 = vsel %vm810, %v1426, 0
      %v1438 = vsel %vm810, %v1427, 0
      %v1441 = vsel %vm817, %v1407, 0
      %1443 = vmatprep.subr.bf16.mxu0 0
      %1444 = vmatpush1.bf16.msra.mxu0 %v1441
      %1445 = vmatprep.subr.bf16.mxu0 0
      %1446 = vmatpush1.bf16.msra.mxu0 0
      %1447 = vmatprep.subr.bf16.mxu0 0
      %1448 = vmatpush1.bf16.msra.mxu0 0
      %1449 = vmatprep.subr.bf16.mxu0 0
      %1450 = vmatpush1.bf16.msra.mxu0 0
      %1451 = vmatprep.subr.bf16.mxu0 0
      %1452 = vmatpush1.bf16.msra.mxu0 0
      %1453 = vmatprep.subr.bf16.mxu0 0
      %1454 = vmatpush1.bf16.msra.mxu0 0
      %1455 = vmatprep.subr.bf16.mxu0 0
      %1456 = vmatpush1.bf16.msra.mxu0 0
      %1457 = vmatprep.subr.bf16.mxu0 0
      %1458 = vmatpush1.bf16.msra.mxu0 0
      %1459 = vmatprep.subr.bf16.mxu0 0
      %1460 = vmatpush1.bf16.msra.mxu0 0
      %1461 = vmatprep.subr.bf16.mxu0 0
      %1462 = vmatpush1.bf16.msra.mxu0 0
      %1463 = vmatprep.subr.bf16.mxu0 0
      %1464 = vmatpush1.bf16.msra.mxu0 0
      %1465 = vmatprep.subr.bf16.mxu0 0
      %1466 = vmatpush1.bf16.msra.mxu0 0
      %1467 = vmatprep.subr.bf16.mxu0 0
      %1468 = vmatpush1.bf16.msra.mxu0 0
      %1469 = vmatprep.subr.bf16.mxu0 0
      %1470 = vmatpush1.bf16.msra.mxu0 0
      %1471 = vmatprep.subr.bf16.mxu0 0
      %1472 = vmatpush1.bf16.msra.mxu0 0
      %1473 = vmatprep.subr.bf16.mxu0 0
      %1474 = vmatpush1.bf16.msra.mxu0 0
      %1475 = vmatprep.mubr.bf16.mxu0 0
      %1476 = vmatmul.mubr.bf16.gmra.mrb[0].mxu0 %v1435
      %v1477 = vpop.f32.mrb[0].mxu0
      %v1478 = vadd.f32 0.0, %v1477
      %v1479 = vpop.f32.mrb[0].mxu0
      %v1480 = vpop.f32.mrb[0].mxu0
      %v1481 = vadd.f32 0.0, %v1480
      %v1482 = vpop.f32.mrb[0].mxu0
      %1483 = vmatprep.mubr.bf16.mxu0 0
      %1484 = vmatmul.mubr.bf16.gmra.mrb[0].mxu0 %v1438
      %v1485 = vpop.f32.mrb[0].mxu0
      %v1486 = vadd.f32 0.0, %v1485
      %v1487 = vpop.f32.mrb[0].mxu0
      %v1488 = vpop.f32.mrb[0].mxu0
      %v1489 = vpop.f32.mrb[0].mxu0
      %1490 = vdwg.mxu0
      %v1491 = vld [vmem:[%s460] sm:$0x3]
      %v1492 = vld [vmem:[%s460 + $0x2] sm:$0x3]
      %v1493 = vld [vmem:[%s460 + $0x4] sm:$0x3]
      %vm1494 = vnez %v1491
      %vm1495 = vnez %v1492
      %vm1496 = vnez %v1493
      %v1497 = vsel %vm1494, 16843009, 0
      %v1498 = vsel %vm1495, 16843009, 0
      %v1499 = vsel %vm1496, 16843009, 0
      %v1500 = vunpack.c.0.s8 %v1497
      %v1501 = vunpack.c.0.s8 %v1498
      %v1502 = vunpack.c.0.s8 %v1499
      %vm1503 = vcmp.ne.s32.totalorder %v1500, 0
      %vm1504 = vcmp.ne.s32.totalorder %v1501, 0
      %vm1505 = vcmp.ne.s32.totalorder %v1502, 0
      %v1506 = vsel %vm1503, %v1478, -10000.0
      %v1507 = vsel %vm1504, %v1481, -10000.0
      %v1508 = vsel %vm1505, %v1486, -10000.0
      %v1509 = vld [vmem:[%s1408] sm:$0x1]
      %v1510 = vsel %vm790, %v1506, -inf
      %v1511 = vsel %vm790, %v1507, -inf
      %v1512 = vsel %vm790, %v1508, -inf
      %v1513 = vmax.f32 %v1510, %v1511
      %v1514 = vmax.f32 %v1513, %v1512
      %v1515 = vrot.slane %v1514, 4
      %v1516 = vmax.f32 %v1514, %v1515
      %v1517 = vrot.slane %v1516, 2
      %v1518 = vmax.f32 %v1516, %v1517
      %v1519 = vrot.slane %v1518, 1
      %v1520 = vmax.f32 %v1518, %v1519
      %v1521 = vmax.f32 %v1509, %v1520
      %v1522 = vsub.f32 %v1509, %v1521
      %v1523 = vmul.f32 %v1522, 1.442695
      %v1524 = vpow.pop %v1523
      %v1526 = vlaneseq
      %v1527 = vshrl.u32 %v1526, 7
      %v1528 = vsub.s32 0, %v1527
      %v1529 = vrot.slane %v1521, %v1528
      %v1531 = vsub.f32 %v1506, %v1529
      %v1532 = vsub.f32 %v1507, %v1529
      %v1533 = vsub.f32 %v1508, %v1529
      %v1534 = vmul.f32 %v1531, 1.442695
      %v1535 = vpow.pop %v1534
      %v1536 = vmul.f32 %v1532, 1.442695
      %v1537 = vpow.pop %v1536
      %v1538 = vmul.f32 %v1533, 1.442695
      %v1539 = vpow.pop %v1538
      %v1540 = vld [vmem:[%s1410] sm:$0x1]
      %v1541 = vmul.f32 %v1524, %v1540
      %v1542 = vsel %vm790, %v1535, 0.0
      %v1543 = vsel %vm790, %v1537, 0.0
      %v1544 = vadd.f32 %v1542, %v1543
      %v1545 = vsel %vm790, %v1539, 0.0
      %v1546 = vadd.f32 %v1544, %v1545
      %v1547 = vrot.slane %v1546, 4
      %v1548 = vadd.f32 %v1546, %v1547
      %v1549 = vrot.slane %v1548, 2
      %v1550 = vadd.f32 %v1548, %v1549
      %v1551 = vrot.slane %v1550, 1
      %v1552 = vadd.f32 %v1550, %v1551
      %v1553 = vadd.f32 %v1541, %v1552
      %1554 = vst.msk [vmem:[%s1410] sm:$0x1] %vm787, %v1553
      %v1555 = vld [vmem:[%s1412] sm:$0xff]
      %v1557 = vlaneseq
      %v1558 = vshrl.u32 %v1557, 7
      %v1559 = vsub.s32 0, %v1558
      %v1560 = vrot.slane %v1524, %v1559
      %v1562 = vmul.f32 %v1560, %v1555
      %v1563 = vpack.c.bf16 %v1537, %v1535
      %v1564 = vpack.c.bf16 %v1539, %v1539
      %v1566 = vsel %vm943, %v1417, 0
      %v1569 = vsel %vm817, %v1564, 0
      %1571 = vmatprep.subr.bf16.mxu0 0
      %1572 = vmatpush1.bf16.msra.mxu0 %v1563
      %1573 = vmatprep.subr.bf16.mxu0 0
      %1574 = vmatpush1.bf16.msra.mxu0 %v1569
      %1575 = vmatprep.subr.bf16.mxu0 0
      %1576 = vmatpush1.bf16.msra.mxu0 0
      %1577 = vmatprep.subr.bf16.mxu0 0
      %1578 = vmatpush1.bf16.msra.mxu0 0
      %1579 = vmatprep.subr.bf16.mxu0 0
      %1580 = vmatpush1.bf16.msra.mxu0 0
      %1581 = vmatprep.subr.bf16.mxu0 0
      %1582 = vmatpush1.bf16.msra.mxu0 0
      %1583 = vmatprep.subr.bf16.mxu0 0
      %1584 = vmatpush1.bf16.msra.mxu0 0
      %1585 = vmatprep.subr.bf16.mxu0 0
      %1586 = vmatpush1.bf16.msra.mxu0 0
      %1587 = vmatprep.subr.bf16.mxu0 0
      %1588 = vmatpush1.bf16.msra.mxu0 0
      %1589 = vmatprep.subr.bf16.mxu0 0
      %1590 = vmatpush1.bf16.msra.mxu0 0
      %1591 = vmatprep.subr.bf16.mxu0 0
      %1592 = vmatpush1.bf16.msra.mxu0 0
      %1593 = vmatprep.subr.bf16.mxu0 0
      %1594 = vmatpush1.bf16.msra.mxu0 0
      %1595 = vmatprep.subr.bf16.mxu0 0
      %1596 = vmatpush1.bf16.msra.mxu0 0
      %1597 = vmatprep.subr.bf16.mxu0 0
      %1598 = vmatpush1.bf16.msra.mxu0 0
      %1599 = vmatprep.subr.bf16.mxu0 0
      %1600 = vmatpush1.bf16.msra.mxu0 0
      %1601 = vmatprep.subr.bf16.mxu0 0
      %1602 = vmatpush1.bf16.msra.mxu0 0
      %1603 = vmatprep.mubr.bf16.mxu0 0
      %1604 = vmatmul.mubr.bf16.gmra.mrb[0].mxu0 %v1566
      %v1605 = vpop.f32.mrb[0].mxu0
      %v1606 = vadd.f32 0.0, %v1605
      %v1607 = vpop.f32.mrb[0].mxu0
      %v1608 = vpop.f32.mrb[0].mxu0
      %v1609 = vpop.f32.mrb[0].mxu0
      %1610 = vdwg.mxu0
      %v1611 = vadd.f32 %v1562, %v1606
      %1612 = vst.msk [vmem:[%s1412] sm:$0xff] %vm790, %v1611
      %1613 = vst.msk [vmem:[%s1408] sm:$0x1] %vm787, %v1521
      %v1614 = vld [vmem:[#allocation4] sm:$0xff]
      %v1615 = vld [vmem:[#allocation4 + $0x8] sm:$0xff]
      %v1616 = vld [vmem:[#allocation4 + $0x10] sm:$0xff]
      %v1617 = vld [vmem:[#allocation4 + $0x18] sm:$0xff]
      %v1618 = vld [vmem:[#allocation6] sm:$0x1]
      %v1619 = vld [vmem:[#allocation6 + $0x1] sm:$0x1]
      %v1620 = vld [vmem:[#allocation6 + $0x2] sm:$0x1]
      %v1621 = vld [vmem:[#allocation6 + $0x3] sm:$0x1]
      %v1622 = vrcp.pop %v1618
      %v1623 = vrcp.pop %v1619
      %v1624 = vrcp.pop %v1620
      %v1625 = vrcp.pop %v1621
      %v1630 = vlaneseq
      %v1631 = vshrl.u32 %v1630, 7
      %v1632 = vsub.s32 0, %v1631
      %v1633 = vrot.slane %v1622, %v1632
      %v1634 = vlaneseq
      %v1635 = vshrl.u32 %v1634, 7
      %v1636 = vsub.s32 0, %v1635
      %v1637 = vrot.slane %v1623, %v1636
      %v1638 = vlaneseq
      %v1639 = vshrl.u32 %v1638, 7
      %v1640 = vsub.s32 0, %v1639
      %v1641 = vrot.slane %v1624, %v1640
      %v1642 = vlaneseq
      %v1643 = vshrl.u32 %v1642, 7
      %v1644 = vsub.s32 0, %v1643
      %v1645 = vrot.slane %v1625, %v1644
      %v1650 = vmul.f32 %v1614, %v1633
      %v1651 = vmul.f32 %v1615, %v1637
      %v1652 = vmul.f32 %v1616, %v1641
      %v1653 = vmul.f32 %v1617, %v1645
      %v1654 = vld [vmem:[%s5] sm:$0xf]
      %v1655 = vld [vmem:[%s5 + $0x4] sm:$0xf]
      %v1656 = vld [vmem:[%s5 + $0x8] sm:$0xf]
      %v1657 = vld [vmem:[%s5 + $0xc] sm:$0xf]
      %v1658 = vpack.c.bf16 %v1651, %v1650
      %v1659 = vpack.c.bf16 %v1653, %v1652
      %v1660 = vld [vmem:[%s9] sm:$0xff]
      %v1661 = vld [vmem:[%s9 + $0x8] sm:$0xff]
      %v1662 = vld [vmem:[%s9 + $0x10] sm:$0xff]
      %v1663 = vld [vmem:[%s9 + $0x18] sm:$0xff]
      %1665 = vset.pattern.permute.xlu0 0
      %1666 = vperm.xlu0 %1665, %v1660
      %v1667 = vpop.permute.xlu0 %1666
      %1670 = vset.pattern.permute.xlu0 0
      %1671 = vperm.xlu0 %1670, %v1661
      %v1672 = vpop.permute.xlu0 %1671
      %1675 = vset.pattern.permute.xlu0 0
      %1676 = vperm.xlu0 %1675, %v1662
      %v1677 = vpop.permute.xlu0 %1676
      %1680 = vset.pattern.permute.xlu0 0
      %1681 = vperm.xlu0 %1680, %v1663
      %v1682 = vpop.permute.xlu0 %1681
      %v1688 = vunpack.c.l.b16 %v1654
      %v1689 = vunpack.c.l.b16 %v1655
      %v1690 = vunpack.c.l.b16 %v1656
      %v1691 = vunpack.c.l.b16 %v1657
      %v1692 = vpack.c.b16 %v1689, %v1688
      %v1693 = vpack.c.b16 %v1691, %v1690
      %v1695 = vsel %vm730, %v1692, 0
      %v1698 = vsel %vm730, %v1693, 0
      %1700 = vmatprep.subr.bf16.mxu0 0
      %1701 = vmatpush1.bf16.msra.mxu0 %v1658
      %1702 = vmatprep.subr.bf16.mxu0 0
      %1703 = vmatpush1.bf16.msra.mxu0 %v1659
      %1704 = vmatprep.subr.bf16.mxu0 0
      %1705 = vmatpush1.bf16.msra.mxu0 0
      %1706 = vmatprep.subr.bf16.mxu0 0
      %1707 = vmatpush1.bf16.msra.mxu0 0
      %1708 = vmatprep.subr.bf16.mxu0 0
      %1709 = vmatpush1.bf16.msra.mxu0 0
      %1710 = vmatprep.subr.bf16.mxu0 0
      %1711 = vmatpush1.bf16.msra.mxu0 0
      %1712 = vmatprep.subr.bf16.mxu0 0
      %1713 = vmatpush1.bf16.msra.mxu0 0
      %1714 = vmatprep.subr.bf16.mxu0 0
      %1715 = vmatpush1.bf16.msra.mxu0 0
      %1716 = vmatprep.subr.bf16.mxu0 0
      %1717 = vmatpush1.bf16.msra.mxu0 0
      %1718 = vmatprep.subr.bf16.mxu0 0
      %1719 = vmatpush1.bf16.msra.mxu0 0
      %1720 = vmatprep.subr.bf16.mxu0 0
      %1721 = vmatpush1.bf16.msra.mxu0 0
      %1722 = vmatprep.subr.bf16.mxu0 0
      %1723 = vmatpush1.bf16.msra.mxu0 0
      %1724 = vmatprep.subr.bf16.mxu0 0
      %1725 = vmatpush1.bf16.msra.mxu0 0
      %1726 = vmatprep.subr.bf16.mxu0 0
      %1727 = vmatpush1.bf16.msra.mxu0 0
      %1728 = vmatprep.subr.bf16.mxu0 0
      %1729 = vmatpush1.bf16.msra.mxu0 0
      %1730 = vmatprep.subr.bf16.mxu0 0
      %1731 = vmatpush1.bf16.msra.mxu0 0
      %1732 = vmatprep.mubr.bf16.mxu0 0
      %1733 = vmatmul.mubr.bf16.gmra.mrb[0].mxu0 %v1695
      %v1734 = vpop.f32.mrb[0].mxu0
      %v1735 = vadd.f32 %v1667, %v1734
      %v1736 = vpop.f32.mrb[0].mxu0
      %v1737 = vpop.f32.mrb[0].mxu0
      %v1738 = vadd.f32 %v1672, %v1737
      %v1739 = vpop.f32.mrb[0].mxu0
      %1740 = vmatprep.mubr.bf16.mxu0 0
      %1741 = vmatmul.mubr.bf16.gmra.mrb[0].mxu0 %v1698
      %v1742 = vpop.f32.mrb[0].mxu0
      %v1743 = vadd.f32 %v1677, %v1742
      %v1744 = vpop.f32.mrb[0].mxu0
      %v1745 = vpop.f32.mrb[0].mxu0
      %v1746 = vadd.f32 %v1682, %v1745
      %v1747 = vpop.f32.mrb[0].mxu0
      %1748 = vdwg.mxu0
      %1749 = vst.msk [vmem:[%s468] sm:$0xff] %vm790, %v1735
      %1750 = vst.msk [vmem:[%s468 + $0x8] sm:$0xff] %vm790, %v1738
      %1751 = vst.msk [vmem:[%s468 + $0x10] sm:$0xff] %vm790, %v1743
      %1752 = vst.msk [vmem:[%s468 + $0x18] sm:$0xff] %vm790, %v1746
      %p1753 = scmp.lt.s32.totalorder %s26, 1
      %s1754 = scalar_select %p1753, %s26, 1
      %p1755 = scmp.lt.s32.totalorder %s27, 0
      %s1756 = scalar_select %p1755, %s27, 0
      %s1757 = smul.addr %s1754, 4
      %s1758 = sadd.s32 %s1756, %s1757
      %s1759 = smul.addr %s1758, 8
      %s1760 = scalar_lea.vmem %s11, %s1759
      // Predicated region
      $region69: #{tpu_custom_call.1} parent=63 // pred_check
        %p1761 = pneg %p304
      $region70: #{tpu_custom_call.1} parent=63 // pred_check_branch
        %1763 = sbr.rel (%p1761) target = $region72
      $region71: #{tpu_custom_call.1} parent=63 // pred_region
        _
      $region72: #{tpu_custom_call.1} parent=63 // pred_fallthru
        _
    $region64: #{tpu_custom_call.1} parent=5 // pred_fallthru
      _
    %p1764 = scmp.le.s32.totalorder 2, %s17
    // Predicated region
    $region73: #{tpu_custom_call.1} parent=5 // pred_check
      %p1765 = pneg %p1764
    $region74: #{tpu_custom_call.1} parent=5 // pred_check_branch
      %1767 = sbr.rel (%p1765) target = $region76
    $region75: #{tpu_custom_call.1} parent=5 // pred_region
      %s1768 = ssub.s32 %s17, 2
      // Predicated region
      $region77: #{tpu_custom_call.1} parent=75 // pred_check
        %p1769 = pneg %p310
      $region78: #{tpu_custom_call.1} parent=75 // pred_check_branch
        %1771 = sbr.rel (%p1769) target = $region80
      $region79: #{tpu_custom_call.1} parent=75 // pred_region
        %p1772 = scmp.lt.s32.totalorder %s28, 1
        %s1773 = scalar_select %p1772, %s28, 1
        %p1774 = scmp.lt.s32.totalorder %s29, 0
        %s1775 = scalar_select %p1774, %s29, 0
        %s1776 = smul.addr %s1773, 4
        %s1777 = sadd.s32 %s1775, %s1776
        %s1778 = smul.addr %s1777, 8
        %s1779 = scalar_lea.vmem %s11, %s1778
      $region80: #{tpu_custom_call.1} parent=75 // pred_fallthru
        _
    $region76: #{tpu_custom_call.1} parent=5 // pred_fallthru
      _
  $region6: #{tpu_custom_call.1} parent=0 // loop_footer
    %s21 = sadd.s32 1, %s17
  $region7: #{tpu_custom_call.1} parent=0 // loop_footer_branch
    %16 = sbr.rel target = $region3
  $region8: #{tpu_custom_call.1} parent=0 // loop_exit
    _

</llo_original>
